<compile_context>
chip_gen: v7x
topology: tpu7x:2x2x1
jax: 0.10.0
libtpu: 0.0.40
codegen_flags: <defaults>
</compile_context>

<pallas_src>
import functools
import math

import jax
import jax.numpy as jnp
from jax.experimental import pallas as pl
from jax.experimental.pallas import tpu as pltpu


def _round_up(x, m):
    return ((x + m - 1) // m) * m


def _vmem_capacity_bytes():
    try:
        info = pltpu.get_tpu_info()
        cap = getattr(info, "vmem_capacity_bytes", None)
        if cap:
            return int(cap)
    except Exception:
        pass
    return 64 * 1024 * 1024  # conservative default (v7x per-TensorCore VMEM)


def _conv_bn_prelu_kernel(x_ref, w_ref, shift_ref, alpha_ref, o_ref, col_ref,
                          *, ksize, stride, dilation, ho, wo):
    """One grid step: in-kernel im2col of an image block + one fused MXU matmul.

    x_ref:     (ipb, Hp, Wp, Cin) f32   padded NHWC input slab (read once from HBM)
    w_ref:     (K*K*Cin, Cout_p)  bf16  conv weight, BN scale folded in, flattened
    shift_ref: (1, Cout_p)        f32   beta - mean * scale (0 in padded lanes)
    alpha_ref: (1, Cout_p)        f32   PReLU slopes
    o_ref:     (M, Cout_p)        f32   lane-dense output rows (M = ipb*Ho*Wo)
    col_ref:   (M, K*K*Cin)       bf16  in-kernel im2col scratch
    """
    cin = x_ref.shape[3]
    m = o_ref.shape[0]

    # Build the im2col matrix in VMEM: K*K shifted window slices packed along the
    # contraction axis (no K^2 HBM traffic; input block is resident in VMEM).
    for kh in range(ksize):
        for kw in range(ksize):
            h0 = kh * dilation
            w0 = kw * dilation
            h1 = h0 + (ho - 1) * stride + 1
            w1 = w0 + (wo - 1) * stride + 1
            sl_h = slice(h0, h1) if stride == 1 else slice(h0, h1, stride)
            sl_w = slice(w0, w1) if stride == 1 else slice(w0, w1, stride)
            patch = x_ref[:, sl_h, sl_w, :]                    # (ipb, Ho, Wo, Cin)
            patch = patch.reshape(m, cin).astype(jnp.bfloat16)  # (M, Cin) bf16
            tap = kh * ksize + kw
            col_ref[:, tap * cin:(tap + 1) * cin] = patch

    # Single MXU matmul: bf16 operands, contraction depth K*K*Cin, f32 accumulation.
    y = jnp.dot(col_ref[...], w_ref[...], preferred_element_type=jnp.float32)

    # Epilogue (f32): BN shift (scale already folded into the weight) + PReLU; one store.
    y = y + shift_ref[...]
    y = jnp.where(y >= 0.0, y, alpha_ref[...] * y)
    o_ref[...] = y.astype(o_ref.dtype)


@functools.partial(jax.jit, static_argnames=("stride", "padding", "dilation", "eps"))
def conv_bn_prelu(x_nchw, weight, gamma, beta, running_mean, running_var, alpha,
                  stride=1, padding=0, dilation=1, eps=1e-5):
    """Forward of _ConvBNPReLU (eval-mode BN, groups=1).

    x_nchw: (N, Cin, H, W) f32; weight: (Cout, Cin, K, K) f32.
    """
    n, cin, h, w = x_nchw.shape
    cout, _, ksize, _ = weight.shape
    ho = (h + 2 * padding - dilation * (ksize - 1) - 1) // stride + 1
    wo = (w + 2 * padding - dilation * (ksize - 1) - 1) // stride + 1
    hp, wp = h + 2 * padding, w + 2 * padding
    kk = ksize * ksize

    # NCHW -> NHWC (+ spatial zero pad).  Single HBM pass of the input.
    # TODO(synk): keep activations NHWC (and bf16) across layers in a real pipeline so
    # these wrapper transposes/pads/slices disappear; done here only to match the
    # PyTorch NCHW f32 interface.
    x_nhwc = jnp.transpose(x_nchw, (0, 2, 3, 1)).astype(jnp.float32)
    x_pad = jnp.pad(x_nhwc, ((0, 0), (padding, padding), (padding, padding), (0, 0)))

    # Eval-mode BN folded to per-channel scale/shift; scale folded into the conv weight.
    scale = gamma / jnp.sqrt(running_var + eps)                       # (Cout,)
    shift = beta - running_mean * scale                               # (Cout,)

    # Weight -> (K*K*Cin, Cout_p), BN-scaled, bf16, Cout zero-padded to a 128 multiple
    # so the output last dim is lane-dense.  Row order (kh, kw, ci) matches the im2col.
    cout_p = max(128, _round_up(cout, 128))
    w_t = jnp.transpose(weight.astype(jnp.float32), (2, 3, 1, 0))     # (K,K,Cin,Cout)
    w_t = w_t * scale[None, None, None, :]
    w_flat = w_t.reshape(kk * cin, cout)
    w_flat = jnp.pad(w_flat, ((0, 0), (0, cout_p - cout))).astype(jnp.bfloat16)

    shift2d = jnp.pad(shift.astype(jnp.float32), (0, cout_p - cout)).reshape(1, cout_p)
    alpha2d = jnp.pad(alpha.astype(jnp.float32), (0, cout_p - cout)).reshape(1, cout_p)

    # ---- Tile sizing (padding-aware VMEM budget, multi-step parallel grid) ----
    rows_per_img = ho * wo
    g = math.gcd(rows_per_img, 8)
    align = 8 // g                      # smallest ipb giving an 8-aligned block row count

    cap_bytes = _vmem_capacity_bytes()
    budget = max(16 << 20, min(int(0.70 * cap_bytes), cap_bytes - (8 << 20)))

    def est_vmem_bytes(ipb_):
        # (8,128)-tile-padded footprints; pipeline double-buffers ins/outs, scratch single.
        m_blk = ipb_ * rows_per_img
        x_blk = ipb_ * hp * _round_up(wp, 8) * _round_up(cin, 128) * 4           # f32
        out_blk = _round_up(m_blk, 8) * cout_p * 4                               # f32
        w_blk = _round_up(kk * cin, 16) * cout_p * 2                             # bf16
        col_blk = _round_up(m_blk, 16) * _round_up(kk * cin, 128) * 2            # bf16 scratch
        small = 2 * 8 * cout_p * 4
        return 2 * (x_blk + out_blk + w_blk + small) + col_blk + (2 << 20)

    target_rows = 2048                  # amortize ~0.35us/step and lengthen MXU bursts
    ipb = max(align, ((target_rows // max(1, rows_per_img)) // align) * align)
    if n >= 2 * align:
        # Keep >= 2 "parallel" grid steps so both v7x TensorCores get work and the
        # image-slab DMA can overlap compute.
        ipb = min(ipb, max(align, ((n // 2) // align) * align))
    while ipb > align and est_vmem_bytes(ipb) > budget:
        ipb -= align

    m_block = ipb * rows_per_img
    n_pad = ((n + ipb - 1) // ipb) * ipb          # pad batch instead of whole-batch fallback
    if n_pad > n:
        x_pad = jnp.pad(x_pad, ((0, n_pad - n), (0, 0), (0, 0), (0, 0)))
    grid = (n_pad // ipb,)

    vmem_limit = int(min(budget, max(2 * est_vmem_bytes(ipb), 16 << 20)))

    kernel = functools.partial(_conv_bn_prelu_kernel, ksize=ksize, stride=stride,
                               dilation=dilation, ho=ho, wo=wo)

    out_flat = pl.pallas_call(
        kernel,
        out_shape=jax.ShapeDtypeStruct((n_pad * rows_per_img, cout_p), jnp.float32),
        grid_spec=pltpu.PrefetchScalarGridSpec(
            num_scalar_prefetch=0,
            grid=grid,
            in_specs=[
                pl.BlockSpec((ipb, hp, wp, cin), lambda i: (i, 0, 0, 0)),
                pl.BlockSpec((kk * cin, cout_p), lambda i: (0, 0)),
                pl.BlockSpec((1, cout_p), lambda i: (0, 0)),
                pl.BlockSpec((1, cout_p), lambda i: (0, 0)),
            ],
            out_specs=pl.BlockSpec((m_block, cout_p), lambda i: (i, 0)),
            scratch_shapes=[pltpu.VMEM((m_block, kk * cin), jnp.bfloat16)],
        ),
        compiler_params=pltpu.CompilerParams(
            dimension_semantics=("parallel",),
            vmem_limit_bytes=vmem_limit,
        ),
    )(x_pad, w_flat, shift2d, alpha2d)

    out_nhwc = out_flat[:n * rows_per_img, :cout].reshape(n, ho, wo, cout)
    # TODO(synk): emit bf16 / keep the NHWC + Cout_p-padded layout if the consumer allows;
    # transposed back to NCHW f32 only to match the PyTorch module interface.
    return jnp.transpose(out_nhwc, (0, 3, 1, 2))


def _reference(x_nchw, weight, gamma, beta, running_mean, running_var, alpha,
               stride, padding, dilation, eps=1e-5):
    y = jax.lax.conv_general_dilated(
        x_nchw, weight,
        window_strides=(stride, stride),
        padding=[(padding, padding), (padding, padding)],
        rhs_dilation=(dilation, dilation),
        dimension_numbers=("NCHW", "OIHW", "NCHW"))
    scale = gamma / jnp.sqrt(running_var + eps)
    shift = beta - running_mean * scale
    y = y * scale[None, :, None, None] + shift[None, :, None, None]
    return jnp.where(y >= 0, y, alpha[None, :, None, None] * y)


if __name__ == "__main__":
    # Module config: _ConvBNPReLU(in_channels=4, out_channels=8, kernel_size=3,
    #                             stride=1, padding=1)
    N, CIN, H, W = 2, 4, 16, 16
    COUT, K = 8, 3
    STRIDE, PAD, DIL = 1, 1, 1

    key = jax.random.PRNGKey(0)
    kx, kw, kg, kb, km, kv = jax.random.split(key, 6)

    x = jax.random.normal(kx, (N, CIN, H, W), dtype=jnp.float32)
    # Conv2d weight (bias=False): (Cout, Cin, K, K)
    weight = jax.random.normal(kw, (COUT, CIN, K, K), dtype=jnp.float32) * 0.1
    # BatchNorm2d params / running stats (per channel)
    gamma = 1.0 + 0.1 * jax.random.normal(kg, (COUT,), dtype=jnp.float32)
    beta = 0.1 * jax.random.normal(kb, (COUT,), dtype=jnp.float32)
    running_mean = 0.1 * jax.random.normal(km, (COUT,), dtype=jnp.float32)
    running_var = jnp.abs(1.0 + 0.1 * jax.random.normal(kv, (COUT,), dtype=jnp.float32))
    # PReLU(num_parameters=Cout): default init 0.25 per channel
    alpha = jnp.full((COUT,), 0.25, dtype=jnp.float32)

    out = conv_bn_prelu(x, weight, gamma, beta, running_mean, running_var, alpha,
                        stride=STRIDE, padding=PAD, dilation=DIL)
    out = jax.block_until_ready(out)

    ref = _reference(x, weight, gamma, beta, running_mean, running_var, alpha,
                     STRIDE, PAD, DIL)
    assert out.shape == (N, COUT, H, W)
    err = float(jnp.max(jnp.abs(out - ref)))
    # bf16 MXU operands with f32 accumulation: tolerance loosened vs the f32 reference.
    assert err < 5e-2, f"mismatch vs reference: max abs err {err}"
    print("KERNEL_OK")
</pallas_src>

<mosaic_0001>
module attributes {stable_mosaic.version = 11 : i64} {
  func.func @_conv_bn_prelu_kernel(%arg0: i32, %arg1: memref<1x18x18x4xf32, #tpu.memory_space<vmem>>, %arg2: memref<36x128xbf16, #tpu.memory_space<vmem>>, %arg3: memref<1x128xf32, #tpu.memory_space<vmem>>, %arg4: memref<1x128xf32, #tpu.memory_space<vmem>>, %arg5: memref<256x128xf32, #tpu.memory_space<vmem>>, %arg6: memref<256x36xbf16, #tpu.memory_space<vmem>>) attributes {dimension_semantics = [#tpu.dimension_semantics<parallel>], iteration_bounds = array<i64: 2>, scalar_prefetch = 0 : i64, scratch_operands = 1 : i64, tpu.core_type = #tpu.core_type<tc>, window_params = [{transform_indices = @transform_0, window_bounds = array<i64: 1, 18, 18, 4>}, {pipeline_mode = #tpu.pipeline_mode<synchronous>, transform_indices = @transform_1, window_bounds = array<i64: 36, 128>}, {pipeline_mode = #tpu.pipeline_mode<synchronous>, transform_indices = @transform_2, window_bounds = array<i64: 1, 128>}, {pipeline_mode = #tpu.pipeline_mode<synchronous>, transform_indices = @transform_3, window_bounds = array<i64: 1, 128>}, {transform_indices = @transform_4, window_bounds = array<i64: 256, 128>}]} {
    %c0 = arith.constant 0 : index
    %c0_0 = arith.constant 0 : index
    %c0_1 = arith.constant 0 : index
    %c0_2 = arith.constant 0 : index
    %0 = vector.load %arg1[%c0, %c0_0, %c0_1, %c0_2] : memref<1x18x18x4xf32, #tpu.memory_space<vmem>>, vector<1x16x16x4xf32>
    %1 = vector.shape_cast %0 : vector<1x16x16x4xf32> to vector<256x4xf32>
    %2 = arith.truncf %1 : vector<256x4xf32> to vector<256x4xbf16>
    %c0_3 = arith.constant 0 : index
    %c0_4 = arith.constant 0 : index
    %3 = vector.load %arg6[%c0_3, %c0_4] : memref<256x36xbf16, #tpu.memory_space<vmem>>, vector<256x4xbf16>
    tpu.vector_store %arg6[%c0_3, %c0_4], %2 {strides = array<i32>} : memref<256x36xbf16, #tpu.memory_space<vmem>>, vector<256x4xbf16>,
    %c0_5 = arith.constant 0 : index
    %c0_6 = arith.constant 0 : index
    %c1 = arith.constant 1 : index
    %c0_7 = arith.constant 0 : index
    %4 = vector.load %arg1[%c0_5, %c0_6, %c1, %c0_7] : memref<1x18x18x4xf32, #tpu.memory_space<vmem>>, vector<1x16x16x4xf32>
    %5 = vector.shape_cast %4 : vector<1x16x16x4xf32> to vector<256x4xf32>
    %6 = arith.truncf %5 : vector<256x4xf32> to vector<256x4xbf16>
    %c0_8 = arith.constant 0 : index
    %c4 = arith.constant 4 : index
    %7 = vector.load %arg6[%c0_8, %c4] : memref<256x36xbf16, #tpu.memory_space<vmem>>, vector<256x4xbf16>
    tpu.vector_store %arg6[%c0_8, %c4], %6 {strides = array<i32>} : memref<256x36xbf16, #tpu.memory_space<vmem>>, vector<256x4xbf16>,
    %c0_9 = arith.constant 0 : index
    %c0_10 = arith.constant 0 : index
    %c2 = arith.constant 2 : index
    %c0_11 = arith.constant 0 : index
    %8 = vector.load %arg1[%c0_9, %c0_10, %c2, %c0_11] : memref<1x18x18x4xf32, #tpu.memory_space<vmem>>, vector<1x16x16x4xf32>
    %9 = vector.shape_cast %8 : vector<1x16x16x4xf32> to vector<256x4xf32>
    %10 = arith.truncf %9 : vector<256x4xf32> to vector<256x4xbf16>
    %c0_12 = arith.constant 0 : index
    %c8 = arith.constant 8 : index
    %11 = vector.load %arg6[%c0_12, %c8] : memref<256x36xbf16, #tpu.memory_space<vmem>>, vector<256x4xbf16>
    tpu.vector_store %arg6[%c0_12, %c8], %10 {strides = array<i32>} : memref<256x36xbf16, #tpu.memory_space<vmem>>, vector<256x4xbf16>,
    %c0_13 = arith.constant 0 : index
    %c1_14 = arith.constant 1 : index
    %c0_15 = arith.constant 0 : index
    %c0_16 = arith.constant 0 : index
    %12 = vector.load %arg1[%c0_13, %c1_14, %c0_15, %c0_16] : memref<1x18x18x4xf32, #tpu.memory_space<vmem>>, vector<1x16x16x4xf32>
    %13 = vector.shape_cast %12 : vector<1x16x16x4xf32> to vector<256x4xf32>
    %14 = arith.truncf %13 : vector<256x4xf32> to vector<256x4xbf16>
    %c0_17 = arith.constant 0 : index
    %c12 = arith.constant 12 : index
    %15 = vector.load %arg6[%c0_17, %c12] : memref<256x36xbf16, #tpu.memory_space<vmem>>, vector<256x4xbf16>
    tpu.vector_store %arg6[%c0_17, %c12], %14 {strides = array<i32>} : memref<256x36xbf16, #tpu.memory_space<vmem>>, vector<256x4xbf16>,
    %c0_18 = arith.constant 0 : index
    %c1_19 = arith.constant 1 : index
    %c1_20 = arith.constant 1 : index
    %c0_21 = arith.constant 0 : index
    %16 = vector.load %arg1[%c0_18, %c1_19, %c1_20, %c0_21] : memref<1x18x18x4xf32, #tpu.memory_space<vmem>>, vector<1x16x16x4xf32>
    %17 = vector.shape_cast %16 : vector<1x16x16x4xf32> to vector<256x4xf32>
    %18 = arith.truncf %17 : vector<256x4xf32> to vector<256x4xbf16>
    %c0_22 = arith.constant 0 : index
    %c16 = arith.constant 16 : index
    %19 = vector.load %arg6[%c0_22, %c16] : memref<256x36xbf16, #tpu.memory_space<vmem>>, vector<256x4xbf16>
    tpu.vector_store %arg6[%c0_22, %c16], %18 {strides = array<i32>} : memref<256x36xbf16, #tpu.memory_space<vmem>>, vector<256x4xbf16>,
    %c0_23 = arith.constant 0 : index
    %c1_24 = arith.constant 1 : index
    %c2_25 = arith.constant 2 : index
    %c0_26 = arith.constant 0 : index
    %20 = vector.load %arg1[%c0_23, %c1_24, %c2_25, %c0_26] : memref<1x18x18x4xf32, #tpu.memory_space<vmem>>, vector<1x16x16x4xf32>
    %21 = vector.shape_cast %20 : vector<1x16x16x4xf32> to vector<256x4xf32>
    %22 = arith.truncf %21 : vector<256x4xf32> to vector<256x4xbf16>
    %c0_27 = arith.constant 0 : index
    %c20 = arith.constant 20 : index
    %23 = vector.load %arg6[%c0_27, %c20] : memref<256x36xbf16, #tpu.memory_space<vmem>>, vector<256x4xbf16>
    tpu.vector_store %arg6[%c0_27, %c20], %22 {strides = array<i32>} : memref<256x36xbf16, #tpu.memory_space<vmem>>, vector<256x4xbf16>,
    %c0_28 = arith.constant 0 : index
    %c2_29 = arith.constant 2 : index
    %c0_30 = arith.constant 0 : index
    %c0_31 = arith.constant 0 : index
    %24 = vector.load %arg1[%c0_28, %c2_29, %c0_30, %c0_31] : memref<1x18x18x4xf32, #tpu.memory_space<vmem>>, vector<1x16x16x4xf32>
    %25 = vector.shape_cast %24 : vector<1x16x16x4xf32> to vector<256x4xf32>
    %26 = arith.truncf %25 : vector<256x4xf32> to vector<256x4xbf16>
    %c0_32 = arith.constant 0 : index
    %c24 = arith.constant 24 : index
    %27 = vector.load %arg6[%c0_32, %c24] : memref<256x36xbf16, #tpu.memory_space<vmem>>, vector<256x4xbf16>
    tpu.vector_store %arg6[%c0_32, %c24], %26 {strides = array<i32>} : memref<256x36xbf16, #tpu.memory_space<vmem>>, vector<256x4xbf16>,
    %c0_33 = arith.constant 0 : index
    %c2_34 = arith.constant 2 : index
    %c1_35 = arith.constant 1 : index
    %c0_36 = arith.constant 0 : index
    %28 = vector.load %arg1[%c0_33, %c2_34, %c1_35, %c0_36] : memref<1x18x18x4xf32, #tpu.memory_space<vmem>>, vector<1x16x16x4xf32>
    %29 = vector.shape_cast %28 : vector<1x16x16x4xf32> to vector<256x4xf32>
    %30 = arith.truncf %29 : vector<256x4xf32> to vector<256x4xbf16>
    %c0_37 = arith.constant 0 : index
    %c28 = arith.constant 28 : index
    %31 = vector.load %arg6[%c0_37, %c28] : memref<256x36xbf16, #tpu.memory_space<vmem>>, vector<256x4xbf16>
    tpu.vector_store %arg6[%c0_37, %c28], %30 {strides = array<i32>} : memref<256x36xbf16, #tpu.memory_space<vmem>>, vector<256x4xbf16>,
    %c0_38 = arith.constant 0 : index
    %c2_39 = arith.constant 2 : index
    %c2_40 = arith.constant 2 : index
    %c0_41 = arith.constant 0 : index
    %32 = vector.load %arg1[%c0_38, %c2_39, %c2_40, %c0_41] : memref<1x18x18x4xf32, #tpu.memory_space<vmem>>, vector<1x16x16x4xf32>
    %33 = vector.shape_cast %32 : vector<1x16x16x4xf32> to vector<256x4xf32>
    %34 = arith.truncf %33 : vector<256x4xf32> to vector<256x4xbf16>
    %c0_42 = arith.constant 0 : index
    %c32 = arith.constant 32 : index
    %35 = vector.load %arg6[%c0_42, %c32] : memref<256x36xbf16, #tpu.memory_space<vmem>>, vector<256x4xbf16>
    tpu.vector_store %arg6[%c0_42, %c32], %34 {strides = array<i32>} : memref<256x36xbf16, #tpu.memory_space<vmem>>, vector<256x4xbf16>,
    %c0_43 = arith.constant 0 : index
    %c0_44 = arith.constant 0 : index
    %36 = vector.load %arg6[%c0_43, %c0_44] : memref<256x36xbf16, #tpu.memory_space<vmem>>, vector<256x36xbf16>
    %c0_45 = arith.constant 0 : index
    %c0_46 = arith.constant 0 : index
    %37 = vector.load %arg2[%c0_45, %c0_46] : memref<36x128xbf16, #tpu.memory_space<vmem>>, vector<36x128xbf16>
    %cst = arith.constant dense<0.000000e+00> : vector<256x128xf32>
    %38 = tpu.matmul %36, %37, %cst {dimension_numbers = #tpu.dot_dimension_numbers<[1], [0], [0], [1], [0, 0, 1, 1], [], []>} : vector<256x36xbf16>, vector<36x128xbf16>, vector<256x128xf32> -> vector<256x128xf32>
    %c0_47 = arith.constant 0 : index
    %c0_48 = arith.constant 0 : index
    %39 = vector.load %arg3[%c0_47, %c0_48] : memref<1x128xf32, #tpu.memory_space<vmem>>, vector<1x128xf32>
    %40 = vector.broadcast %39 : vector<1x128xf32> to vector<256x128xf32>
    %41 = arith.addf %38, %40 : vector<256x128xf32>
    %cst_49 = arith.constant 0.000000e+00 : f32
    %42 = vector.broadcast %cst_49 : f32 to vector<256x128xf32>
    %43 = arith.cmpf oge, %41, %42 : vector<256x128xf32>
    %c0_50 = arith.constant 0 : index
    %c0_51 = arith.constant 0 : index
    %44 = vector.load %arg4[%c0_50, %c0_51] : memref<1x128xf32, #tpu.memory_space<vmem>>, vector<1x128xf32>
    %45 = vector.broadcast %44 : vector<1x128xf32> to vector<256x128xf32>
    %46 = arith.mulf %45, %41 : vector<256x128xf32>
    %47 = arith.select %43, %41, %46 : vector<256x128xi1>, vector<256x128xf32>
    %c0_52 = arith.constant 0 : index
    %c0_53 = arith.constant 0 : index
    %48 = vector.load %arg5[%c0_52, %c0_53] : memref<256x128xf32, #tpu.memory_space<vmem>>, vector<256x128xf32>
    tpu.vector_store %arg5[%c0_52, %c0_53], %47 {strides = array<i32>} : memref<256x128xf32, #tpu.memory_space<vmem>>, vector<256x128xf32>,
    return
  }
  func.func @transform_0(%arg0: i32) -> (i32, i32, i32, i32) {
    %c0_i32 = arith.constant 0 : i32
    %c0_i32_0 = arith.constant 0 : i32
    %c0_i32_1 = arith.constant 0 : i32
    %c0_i32_2 = arith.constant 0 : i32
    return %arg0, %c0_i32, %c0_i32_0, %c0_i32_1 : i32, i32, i32, i32
  }
  func.func @transform_1(%arg0: i32) -> (i32, i32) {
    %c0_i32 = arith.constant 0 : i32
    %c0_i32_0 = arith.constant 0 : i32
    %c0_i32_1 = arith.constant 0 : i32
    return %c0_i32, %c0_i32_0 : i32, i32
  }
  func.func @transform_2(%arg0: i32) -> (i32, i32) {
    %c0_i32 = arith.constant 0 : i32
    %c0_i32_0 = arith.constant 0 : i32
    %c0_i32_1 = arith.constant 0 : i32
    return %c0_i32, %c0_i32_0 : i32, i32
  }
  func.func @transform_3(%arg0: i32) -> (i32, i32) {
    %c0_i32 = arith.constant 0 : i32
    %c0_i32_0 = arith.constant 0 : i32
    %c0_i32_1 = arith.constant 0 : i32
    return %c0_i32, %c0_i32_0 : i32, i32
  }
  func.func @transform_4(%arg0: i32) -> (i32, i32) {
    %c0_i32 = arith.constant 0 : i32
    %c0_i32_0 = arith.constant 0 : i32
    return %arg0, %c0_i32 : i32, i32
  }
}

</mosaic_0001>

<llo_original>
// kernel: conv_bn_prelu.1
$region0: #{conv_bn_prelu.1}
  #allocation0 [shape = 'u32[]', space=smem, size = 0x4, offset = 0x4, fixed_abs, tag = 'smem constant byte address 0x4 - core index']
  #allocation1 [shape = 'u32[144,128]{1,0:T(1,128)}', space=vmem, size = 0x12000, scoped, tag = 'internal scratch']
  #allocation2 [shape = 'bf16[256,36]{1,0:T(16,128)(2,1)}', space=vmem, size = 0x10000, scoped, tag = 'scratch operand']
  %s0 = inlined_call_operand.vmem [shape: f32[2,18,18,4], index: 0, kind: input, shape index: {}]
  %s1 = inlined_call_operand.vmem [shape: bf16[36,128], index: 1, kind: input, shape index: {}]
  %s2 = inlined_call_operand.vmem [shape: f32[1,128], index: 2, kind: input, shape index: {}]
  %s3 = inlined_call_operand.vmem [shape: f32[1,128], index: 3, kind: input, shape index: {}]
  %s4 = inlined_call_operand.vmem [shape: f32[512,128], index: 4, kind: output, shape index: {}]
  %s5 = sld [smem:[#allocation0]]
  $region49: #{conv_bn_prelu.1} parent=0
    _
  %s7 = ssub.s32 1, %s5
  %s8 = scalar_select 0, %s7, %s5
  loop: start=0, step=1, limit=4
  $region2: #{conv_bn_prelu.1} parent=0 // loop_pre_header
    _
  $region3: #{conv_bn_prelu.1} parent=0 // loop_header
    %s10 = sphi 0, %s14
    %p11 = scmp.ge.s32.totalorder %s10, 4
    %s20 = sphi 0, %s22
    %s23 = sphi 0, %s20
    %s24 = sphi 0, %s23
    %s40 = sphi 0, %s24
    %s44 = sphi 0, %s44
    %s46 = sphi 0, %s44
    %s47 = sphi 0, %s46
    %s61 = sphi 0, %s47
    %s65 = sphi 0, %s65
    %s67 = sphi 0, %s65
    %s68 = sphi 0, %s67
    %s82 = sphi 0, %s68
    %s86 = sphi 0, %s86
    %s88 = sphi 0, %s86
    %s89 = sphi 0, %s88
    %s103 = sphi 0, %s89
    %s109 = sphi 0, %s111
    %s112 = sphi 0, %s109
    %s113 = sphi 0, %s112
    %s129 = sphi 0, %s113
  $region4: #{conv_bn_prelu.1} parent=0 // loop_header_branch
    %13 = sbr.rel (%p11) target = $region8
  $region5: #{conv_bn_prelu.1} parent=0 // loop_body
    %s15 = ssub.s32 %s10, 1
    %s16 = ssub.s32 %s10, 2
    %s17 = sadd.s32 %s10, 1
    %s18 = ssub.s32 %s10, %s17
    %p19 = scmp.eq.s32.totalorder %s18, 0
    %s21 = sadd.s32 %s20, 1
    %s22 = scalar_select %p19, %s20, %s21
    %p25 = pneg %p19
    %p26 = scmp.eq.s32.totalorder %s10, 1
    %p27 = por %p25, %p26
    %p28 = scmp.ne.s32.totalorder %s20, %s23
    %p29 = scmp.eq.s32.totalorder %s10, 0
    %p30 = por %p28, %p29
    %p31 = scmp.ne.s32.totalorder %s20, %s23
    %p32 = scmp.eq.s32.totalorder %s15, 1
    %p33 = por %p31, %p32
    %p34 = scmp.ne.s32.totalorder %s23, %s24
    %p35 = scmp.eq.s32.totalorder %s15, 0
    %p36 = por %p34, %p35
    %p37 = scmp.ne.s32.totalorder %s23, %s24
    %p38 = scmp.eq.s32.totalorder %s16, 1
    %p39 = por %p37, %p38
    %p41 = scmp.ne.s32.totalorder %s24, %s40
    %p42 = scmp.eq.s32.totalorder %s16, 0
    %p43 = por %p41, %p42
    %s45 = sadd.s32 %s44, 1
    %p48 = scmp.eq.s32.totalorder %s10, 1
    %p49 = scmp.ne.s32.totalorder %s44, %s46
    %p50 = scmp.eq.s32.totalorder %s10, 0
    %p51 = por %p49, %p50
    %p52 = scmp.ne.s32.totalorder %s44, %s46
    %p53 = scmp.eq.s32.totalorder %s15, 1
    %p54 = por %p52, %p53
    %p55 = scmp.ne.s32.totalorder %s46, %s47
    %p56 = scmp.eq.s32.totalorder %s15, 0
    %p57 = por %p55, %p56
    %p58 = scmp.ne.s32.totalorder %s46, %s47
    %p59 = scmp.eq.s32.totalorder %s16, 1
    %p60 = por %p58, %p59
    %p62 = scmp.ne.s32.totalorder %s47, %s61
    %p63 = scmp.eq.s32.totalorder %s16, 0
    %p64 = por %p62, %p63
    %s66 = sadd.s32 %s65, 1
    %p69 = scmp.eq.s32.totalorder %s10, 1
    %p70 = scmp.ne.s32.totalorder %s65, %s67
    %p71 = scmp.eq.s32.totalorder %s10, 0
    %p72 = por %p70, %p71
    %p73 = scmp.ne.s32.totalorder %s65, %s67
    %p74 = scmp.eq.s32.totalorder %s15, 1
    %p75 = por %p73, %p74
    %p76 = scmp.ne.s32.totalorder %s67, %s68
    %p77 = scmp.eq.s32.totalorder %s15, 0
    %p78 = por %p76, %p77
    %p79 = scmp.ne.s32.totalorder %s67, %s68
    %p80 = scmp.eq.s32.totalorder %s16, 1
    %p81 = por %p79, %p80
    %p83 = scmp.ne.s32.totalorder %s68, %s82
    %p84 = scmp.eq.s32.totalorder %s16, 0
    %p85 = por %p83, %p84
    %s87 = sadd.s32 %s86, 1
    %p90 = scmp.eq.s32.totalorder %s10, 1
    %p91 = scmp.ne.s32.totalorder %s86, %s88
    %p92 = scmp.eq.s32.totalorder %s10, 0
    %p93 = por %p91, %p92
    %p94 = scmp.ne.s32.totalorder %s86, %s88
    %p95 = scmp.eq.s32.totalorder %s15, 1
    %p96 = por %p94, %p95
    %p97 = scmp.ne.s32.totalorder %s88, %s89
    %p98 = scmp.eq.s32.totalorder %s15, 0
    %p99 = por %p97, %p98
    %p100 = scmp.ne.s32.totalorder %s88, %s89
    %p101 = scmp.eq.s32.totalorder %s16, 1
    %p102 = por %p100, %p101
    %p104 = scmp.ne.s32.totalorder %s89, %s103
    %p105 = scmp.eq.s32.totalorder %s16, 0
    %p106 = por %p104, %p105
    %s107 = ssub.s32 %s10, %s17
    %p108 = scmp.eq.s32.totalorder %s107, 0
    %s110 = sadd.s32 %s109, 1
    %s111 = scalar_select %p108, %s109, %s110
    %p114 = pneg %p108
    %p115 = scmp.eq.s32.totalorder %s10, 1
    %p116 = por %p114, %p115
    %p117 = scmp.ne.s32.totalorder %s109, %s112
    %p118 = scmp.eq.s32.totalorder %s10, 0
    %p119 = por %p117, %p118
    %p120 = scmp.ne.s32.totalorder %s109, %s112
    %p121 = scmp.eq.s32.totalorder %s15, 1
    %p122 = por %p120, %p121
    %p123 = scmp.ne.s32.totalorder %s112, %s113
    %p124 = scmp.eq.s32.totalorder %s15, 0
    %p125 = por %p123, %p124
    %p126 = scmp.ne.s32.totalorder %s112, %s113
    %p127 = scmp.eq.s32.totalorder %s16, 1
    %p128 = por %p126, %p127
    %p130 = scmp.ne.s32.totalorder %s113, %s129
    %p131 = scmp.eq.s32.totalorder %s16, 0
    %p132 = por %p130, %p131
    %p133 = scmp.le.s32.totalorder 1, %s10
    %p134 = scmp.lt.s32.totalorder %s10, 3
    %p135 = pnand %p133, %p134
    %p136 = pneg %p135
    // Predicated region
    $region9: #{conv_bn_prelu.1} parent=5 // pred_check
      _
    $region10: #{conv_bn_prelu.1} parent=5 // pred_check_branch
      %138 = sbr.rel (%p135) target = $region12
    $region11: #{conv_bn_prelu.1} parent=5 // pred_region
      %s139 = ssub.s32 %s10, 1
      // Predicated region
      $region13: #{conv_bn_prelu.1} parent=11 // pred_check
        %p140 = pneg %p57
      $region14: #{conv_bn_prelu.1} parent=11 // pred_check_branch
        %142 = sbr.rel (%p140) target = $region16
      $region15: #{conv_bn_prelu.1} parent=11 // pred_region
        _
      $region16: #{conv_bn_prelu.1} parent=11 // pred_fallthru
        _
      // Predicated region
      $region17: #{conv_bn_prelu.1} parent=11 // pred_check
        %p143 = pneg %p78
      $region18: #{conv_bn_prelu.1} parent=11 // pred_check_branch
        %145 = sbr.rel (%p143) target = $region20
      $region19: #{conv_bn_prelu.1} parent=11 // pred_region
        _
      $region20: #{conv_bn_prelu.1} parent=11 // pred_fallthru
        _
      // Predicated region
      $region21: #{conv_bn_prelu.1} parent=11 // pred_check
        %p146 = pneg %p99
      $region22: #{conv_bn_prelu.1} parent=11 // pred_check_branch
        %148 = sbr.rel (%p146) target = $region24
      $region23: #{conv_bn_prelu.1} parent=11 // pred_region
        _
      $region24: #{conv_bn_prelu.1} parent=11 // pred_fallthru
        _
    $region12: #{conv_bn_prelu.1} parent=5 // pred_fallthru
      _
    %p149 = scmp.lt.s32.totalorder %s10, 2
    // Predicated region
    $region25: #{conv_bn_prelu.1} parent=5 // pred_check
      %p150 = pneg %p149
    $region26: #{conv_bn_prelu.1} parent=5 // pred_check_branch
      %152 = sbr.rel (%p150) target = $region28
    $region27: #{conv_bn_prelu.1} parent=5 // pred_region
      // Predicated region
      $region29: #{conv_bn_prelu.1} parent=27 // pred_check
        %p153 = pneg %p30
      $region30: #{conv_bn_prelu.1} parent=27 // pred_check_branch
        %155 = sbr.rel (%p153) target = $region32
      $region31: #{conv_bn_prelu.1} parent=27 // pred_region
        %p156 = scmp.lt.s32.totalorder %s10, 1
        %s157 = scalar_select %p156, %s10, 1
        %s158 = smul.addr %s157, 54
        %s159 = smul.addr %s158, 8
        %s160 = scalar_lea.vmem %s0, %s159
      $region32: #{conv_bn_prelu.1} parent=27 // pred_fallthru
        _
    $region28: #{conv_bn_prelu.1} parent=5 // pred_fallthru
      _
    %p161 = scmp.le.s32.totalorder 1, %s10
    %p162 = scmp.lt.s32.totalorder %s10, 3
    %p163 = pnand %p161, %p162
    %p164 = pneg %p163
    // Predicated region
    $region33: #{conv_bn_prelu.1} parent=5 // pred_check
      _
    $region34: #{conv_bn_prelu.1} parent=5 // pred_check_branch
      %166 = sbr.rel (%p163) target = $region36
    $region35: #{conv_bn_prelu.1} parent=5 // pred_region
      %s167 = ssub.s32 %s10, 1
      %p168 = scmp.lt.s32.totalorder %s15, 1
      %s169 = scalar_select %p168, %s15, 1
      %s170 = smul.addr %s169, 54
      %s171 = smul.addr %s170, 8
      %s172 = scalar_lea.vmem %s0, %s171
      %p173 = pneg %p36
      %p174 = pneg %p33
      %p175 = pneg %p57
      %p176 = pneg %p54
      %p177 = pneg %p78
      %p178 = pneg %p75
      %p179 = pneg %p99
      %p180 = pneg %p96
      %p181 = pneg %p125
      %p182 = pneg %p122
      %s183 = smul.u32 32, %s15
      %p184 = scmp.lt.s32.totalorder %s183, 63
      %s185 = scalar_select %p184, %s183, 63
      %s186 = smul.addr %s185, 8
      %s187 = scalar_lea.vmem %s4, %s186
      %p188 = scmp.lt.s32.totalorder %s15, 1
      %s189 = scalar_select %p188, %s15, 1
      %s190 = smul.addr %s189, 54
      %s191 = smul.addr %s190, 8
      %s192 = scalar_lea.vmem %s0, %s191
      %s193 = smul.u32 32, %s15
      %p194 = scmp.lt.s32.totalorder %s193, 63
      %s195 = scalar_select %p194, %s193, 63
      %s196 = smul.addr %s195, 8
      %s197 = scalar_lea.vmem %s4, %s196
      %s198 = smul.u32 32, %s15
      %v200 = vld [vmem:[%s192] sm:$0xff]
      %v201 = vld [vmem:[%s192 + $0x8] sm:$0xff]
      %v202 = vld [vmem:[%s192 + $0x18] sm:$0xff]
      %v203 = vld [vmem:[%s192 + $0x20] sm:$0xff]
      %v204 = vld [vmem:[%s192 + $0x30] sm:$0xff]
      %v205 = vld [vmem:[%s192 + $0x38] sm:$0xff]
      %v206 = vld [vmem:[%s192 + $0x48] sm:$0xff]
      %v207 = vld [vmem:[%s192 + $0x50] sm:$0xff]
      %v208 = vld [vmem:[%s192 + $0x60] sm:$0xff]
      %v209 = vld [vmem:[%s192 + $0x68] sm:$0xff]
      %v210 = vld [vmem:[%s192 + $0x78] sm:$0xff]
      %v211 = vld [vmem:[%s192 + $0x80] sm:$0xff]
      %v212 = vld [vmem:[%s192 + $0x90] sm:$0xff]
      %v213 = vld [vmem:[%s192 + $0x98] sm:$0xff]
      %v214 = vld [vmem:[%s192 + $0xa8] sm:$0xff]
      %v215 = vld [vmem:[%s192 + $0xb0] sm:$0xff]
      %v216 = vld [vmem:[%s192 + $0xc0] sm:$0xff]
      %v217 = vld [vmem:[%s192 + $0xc8] sm:$0xff]
      %v218 = vld [vmem:[%s192 + $0xd8] sm:$0xff]
      %v219 = vld [vmem:[%s192 + $0xe0] sm:$0xff]
      %v220 = vld [vmem:[%s192 + $0xf0] sm:$0xff]
      %v221 = vld [vmem:[%s192 + $0xf8] sm:$0xff]
      %v222 = vld [vmem:[%s192 + $0x108] sm:$0xff]
      %v223 = vld [vmem:[%s192 + $0x110] sm:$0xff]
      %v224 = vld [vmem:[%s192 + $0x120] sm:$0xff]
      %v225 = vld [vmem:[%s192 + $0x128] sm:$0xff]
      %v226 = vld [vmem:[%s192 + $0x138] sm:$0xff]
      %v227 = vld [vmem:[%s192 + $0x140] sm:$0xff]
      %v228 = vld [vmem:[%s192 + $0x150] sm:$0xff]
      %v229 = vld [vmem:[%s192 + $0x158] sm:$0xff]
      %v230 = vld [vmem:[%s192 + $0x168] sm:$0xff]
      %v231 = vld [vmem:[%s192 + $0x170] sm:$0xff]
      %v232 = vpack.c.bf16 %v201, %v200
      %v233 = vpack.c.bf16 %v203, %v202
      %v234 = vpack.c.bf16 %v205, %v204
      %v235 = vpack.c.bf16 %v207, %v206
      %v236 = vpack.c.bf16 %v209, %v208
      %v237 = vpack.c.bf16 %v211, %v210
      %v238 = vpack.c.bf16 %v213, %v212
      %v239 = vpack.c.bf16 %v215, %v214
      %v240 = vpack.c.bf16 %v217, %v216
      %v241 = vpack.c.bf16 %v219, %v218
      %v242 = vpack.c.bf16 %v221, %v220
      %v243 = vpack.c.bf16 %v223, %v222
      %v244 = vpack.c.bf16 %v225, %v224
      %v245 = vpack.c.bf16 %v227, %v226
      %v246 = vpack.c.bf16 %v229, %v228
      %v247 = vpack.c.bf16 %v231, %v230
      %vm248 = vcmask 31744
      %249 = vst.msk [vmem:[#allocation2] sm:$0xff] %vm248, %v232
      %250 = vst.msk [vmem:[#allocation2 + $0x8] sm:$0xff] %vm248, %v233
      %251 = vst.msk [vmem:[#allocation2 + $0x10] sm:$0xff] %vm248, %v234
      %252 = vst.msk [vmem:[#allocation2 + $0x18] sm:$0xff] %vm248, %v235
      %253 = vst.msk [vmem:[#allocation2 + $0x20] sm:$0xff] %vm248, %v236
      %254 = vst.msk [vmem:[#allocation2 + $0x28] sm:$0xff] %vm248, %v237
      %255 = vst.msk [vmem:[#allocation2 + $0x30] sm:$0xff] %vm248, %v238
      %256 = vst.msk [vmem:[#allocation2 + $0x38] sm:$0xff] %vm248, %v239
      %257 = vst.msk [vmem:[#allocation2 + $0x40] sm:$0xff] %vm248, %v240
      %258 = vst.msk [vmem:[#allocation2 + $0x48] sm:$0xff] %vm248, %v241
      %259 = vst.msk [vmem:[#allocation2 + $0x50] sm:$0xff] %vm248, %v242
      %260 = vst.msk [vmem:[#allocation2 + $0x58] sm:$0xff] %vm248, %v243
      %261 = vst.msk [vmem:[#allocation2 + $0x60] sm:$0xff] %vm248, %v244
      %262 = vst.msk [vmem:[#allocation2 + $0x68] sm:$0xff] %vm248, %v245
      %263 = vst.msk [vmem:[#allocation2 + $0x70] sm:$0xff] %vm248, %v246
      %264 = vst.msk [vmem:[#allocation2 + $0x78] sm:$0xff] %vm248, %v247
      %v265 = vld [vmem:[%s192 + $0x1] sm:$0xff]
      %v266 = vld [vmem:[%s192 + $0x9] sm:$0xff]
      %v267 = vld [vmem:[%s192 + $0x19] sm:$0xff]
      %v268 = vld [vmem:[%s192 + $0x21] sm:$0xff]
      %v269 = vld [vmem:[%s192 + $0x31] sm:$0xff]
      %v270 = vld [vmem:[%s192 + $0x39] sm:$0xff]
      %v271 = vld [vmem:[%s192 + $0x49] sm:$0xff]
      %v272 = vld [vmem:[%s192 + $0x51] sm:$0xff]
      %v273 = vld [vmem:[%s192 + $0x61] sm:$0xff]
      %v274 = vld [vmem:[%s192 + $0x69] sm:$0xff]
      %v275 = vld [vmem:[%s192 + $0x79] sm:$0xff]
      %v276 = vld [vmem:[%s192 + $0x81] sm:$0xff]
      %v277 = vld [vmem:[%s192 + $0x91] sm:$0xff]
      %v278 = vld [vmem:[%s192 + $0x99] sm:$0xff]
      %v279 = vld [vmem:[%s192 + $0xa9] sm:$0xff]
      %v280 = vld [vmem:[%s192 + $0xb1] sm:$0xff]
      %v281 = vld [vmem:[%s192 + $0xc1] sm:$0xff]
      %v282 = vld [vmem:[%s192 + $0xc9] sm:$0xff]
      %v283 = vld [vmem:[%s192 + $0xd9] sm:$0xff]
      %v284 = vld [vmem:[%s192 + $0xe1] sm:$0xff]
      %v285 = vld [vmem:[%s192 + $0xf1] sm:$0xff]
      %v286 = vld [vmem:[%s192 + $0xf9] sm:$0xff]
      %v287 = vld [vmem:[%s192 + $0x109] sm:$0xff]
      %v288 = vld [vmem:[%s192 + $0x111] sm:$0xff]
      %v289 = vld [vmem:[%s192 + $0x121] sm:$0xff]
      %v290 = vld [vmem:[%s192 + $0x129] sm:$0xff]
      %v291 = vld [vmem:[%s192 + $0x139] sm:$0xff]
      %v292 = vld [vmem:[%s192 + $0x141] sm:$0xff]
      %v293 = vld [vmem:[%s192 + $0x151] sm:$0xff]
      %v294 = vld [vmem:[%s192 + $0x159] sm:$0xff]
      %v295 = vld [vmem:[%s192 + $0x169] sm:$0xff]
      %v296 = vld [vmem:[%s192 + $0x171] sm:$0xff]
      %v297 = vpack.c.bf16 %v266, %v265
      %v298 = vpack.c.bf16 %v268, %v267
      %v299 = vpack.c.bf16 %v270, %v269
      %v300 = vpack.c.bf16 %v272, %v271
      %v301 = vpack.c.bf16 %v274, %v273
      %v302 = vpack.c.bf16 %v276, %v275
      %v303 = vpack.c.bf16 %v278, %v277
      %v304 = vpack.c.bf16 %v280, %v279
      %v305 = vpack.c.bf16 %v282, %v281
      %v306 = vpack.c.bf16 %v284, %v283
      %v307 = vpack.c.bf16 %v286, %v285
      %v308 = vpack.c.bf16 %v288, %v287
      %v309 = vpack.c.bf16 %v290, %v289
      %v310 = vpack.c.bf16 %v292, %v291
      %v311 = vpack.c.bf16 %v294, %v293
      %v312 = vpack.c.bf16 %v296, %v295
      %329 = vrot.lane.b32.xlu0 %v297, 4
      %v330 = vpop.permute.xlu0 %329
      %331 = vrot.lane.b32.xlu0 %v298, 4
      %v332 = vpop.permute.xlu0 %331
      %333 = vrot.lane.b32.xlu0 %v299, 4
      %v334 = vpop.permute.xlu0 %333
      %335 = vrot.lane.b32.xlu0 %v300, 4
      %v336 = vpop.permute.xlu0 %335
      %337 = vrot.lane.b32.xlu0 %v301, 4
      %v338 = vpop.permute.xlu0 %337
      %339 = vrot.lane.b32.xlu0 %v302, 4
      %v340 = vpop.permute.xlu0 %339
      %341 = vrot.lane.b32.xlu0 %v303, 4
      %v342 = vpop.permute.xlu0 %341
      %343 = vrot.lane.b32.xlu0 %v304, 4
      %v344 = vpop.permute.xlu0 %343
      %345 = vrot.lane.b32.xlu0 %v305, 4
      %v346 = vpop.permute.xlu0 %345
      %347 = vrot.lane.b32.xlu0 %v306, 4
      %v348 = vpop.permute.xlu0 %347
      %349 = vrot.lane.b32.xlu0 %v307, 4
      %v350 = vpop.permute.xlu0 %349
      %351 = vrot.lane.b32.xlu0 %v308, 4
      %v352 = vpop.permute.xlu0 %351
      %353 = vrot.lane.b32.xlu0 %v309, 4
      %v354 = vpop.permute.xlu0 %353
      %355 = vrot.lane.b32.xlu0 %v310, 4
      %v356 = vpop.permute.xlu0 %355
      %357 = vrot.lane.b32.xlu0 %v311, 4
      %v358 = vpop.permute.xlu0 %357
      %359 = vrot.lane.b32.xlu0 %v312, 4
      %v360 = vpop.permute.xlu0 %359
      %vm377 = vcmask 64544
      %378 = vst.msk [vmem:[#allocation2] sm:$0xff] %vm377, %v330
      %379 = vst.msk [vmem:[#allocation2 + $0x8] sm:$0xff] %vm377, %v332
      %380 = vst.msk [vmem:[#allocation2 + $0x10] sm:$0xff] %vm377, %v334
      %381 = vst.msk [vmem:[#allocation2 + $0x18] sm:$0xff] %vm377, %v336
      %382 = vst.msk [vmem:[#allocation2 + $0x20] sm:$0xff] %vm377, %v338
      %383 = vst.msk [vmem:[#allocation2 + $0x28] sm:$0xff] %vm377, %v340
      %384 = vst.msk [vmem:[#allocation2 + $0x30] sm:$0xff] %vm377, %v342
      %385 = vst.msk [vmem:[#allocation2 + $0x38] sm:$0xff] %vm377, %v344
      %386 = vst.msk [vmem:[#allocation2 + $0x40] sm:$0xff] %vm377, %v346
      %387 = vst.msk [vmem:[#allocation2 + $0x48] sm:$0xff] %vm377, %v348
      %388 = vst.msk [vmem:[#allocation2 + $0x50] sm:$0xff] %vm377, %v350
      %389 = vst.msk [vmem:[#allocation2 + $0x58] sm:$0xff] %vm377, %v352
      %390 = vst.msk [vmem:[#allocation2 + $0x60] sm:$0xff] %vm377, %v354
      %391 = vst.msk [vmem:[#allocation2 + $0x68] sm:$0xff] %vm377, %v356
      %392 = vst.msk [vmem:[#allocation2 + $0x70] sm:$0xff] %vm377, %v358
      %393 = vst.msk [vmem:[#allocation2 + $0x78] sm:$0xff] %vm377, %v360
      %v394 = vld [vmem:[%s192 + $0x2] sm:$0xff]
      %v395 = vld [vmem:[%s192 + $0xa] sm:$0xff]
      %v396 = vld [vmem:[%s192 + $0x1a] sm:$0xff]
      %v397 = vld [vmem:[%s192 + $0x22] sm:$0xff]
      %v398 = vld [vmem:[%s192 + $0x32] sm:$0xff]
      %v399 = vld [vmem:[%s192 + $0x3a] sm:$0xff]
      %v400 = vld [vmem:[%s192 + $0x4a] sm:$0xff]
      %v401 = vld [vmem:[%s192 + $0x52] sm:$0xff]
      %v402 = vld [vmem:[%s192 + $0x62] sm:$0xff]
      %v403 = vld [vmem:[%s192 + $0x6a] sm:$0xff]
      %v404 = vld [vmem:[%s192 + $0x7a] sm:$0xff]
      %v405 = vld [vmem:[%s192 + $0x82] sm:$0xff]
      %v406 = vld [vmem:[%s192 + $0x92] sm:$0xff]
      %v407 = vld [vmem:[%s192 + $0x9a] sm:$0xff]
      %v408 = vld [vmem:[%s192 + $0xaa] sm:$0xff]
      %v409 = vld [vmem:[%s192 + $0xb2] sm:$0xff]
      %v410 = vld [vmem:[%s192 + $0xc2] sm:$0xff]
      %v411 = vld [vmem:[%s192 + $0xca] sm:$0xff]
      %v412 = vld [vmem:[%s192 + $0xda] sm:$0xff]
      %v413 = vld [vmem:[%s192 + $0xe2] sm:$0xff]
      %v414 = vld [vmem:[%s192 + $0xf2] sm:$0xff]
      %v415 = vld [vmem:[%s192 + $0xfa] sm:$0xff]
      %v416 = vld [vmem:[%s192 + $0x10a] sm:$0xff]
      %v417 = vld [vmem:[%s192 + $0x112] sm:$0xff]
      %v418 = vld [vmem:[%s192 + $0x122] sm:$0xff]
      %v419 = vld [vmem:[%s192 + $0x12a] sm:$0xff]
      %v420 = vld [vmem:[%s192 + $0x13a] sm:$0xff]
      %v421 = vld [vmem:[%s192 + $0x142] sm:$0xff]
      %v422 = vld [vmem:[%s192 + $0x152] sm:$0xff]
      %v423 = vld [vmem:[%s192 + $0x15a] sm:$0xff]
      %v424 = vld [vmem:[%s192 + $0x16a] sm:$0xff]
      %v425 = vld [vmem:[%s192 + $0x172] sm:$0xff]
      %v426 = vpack.c.bf16 %v395, %v394
      %v427 = vpack.c.bf16 %v397, %v396
      %v428 = vpack.c.bf16 %v399, %v398
      %v429 = vpack.c.bf16 %v401, %v400
      %v430 = vpack.c.bf16 %v403, %v402
      %v431 = vpack.c.bf16 %v405, %v404
      %v432 = vpack.c.bf16 %v407, %v406
      %v433 = vpack.c.bf16 %v409, %v408
      %v434 = vpack.c.bf16 %v411, %v410
      %v435 = vpack.c.bf16 %v413, %v412
      %v436 = vpack.c.bf16 %v415, %v414
      %v437 = vpack.c.bf16 %v417, %v416
      %v438 = vpack.c.bf16 %v419, %v418
      %v439 = vpack.c.bf16 %v421, %v420
      %v440 = vpack.c.bf16 %v423, %v422
      %v441 = vpack.c.bf16 %v425, %v424
      %458 = vrot.lane.b32.xlu0 %v426, 8
      %v459 = vpop.permute.xlu0 %458
      %460 = vrot.lane.b32.xlu0 %v427, 8
      %v461 = vpop.permute.xlu0 %460
      %462 = vrot.lane.b32.xlu0 %v428, 8
      %v463 = vpop.permute.xlu0 %462
      %464 = vrot.lane.b32.xlu0 %v429, 8
      %v465 = vpop.permute.xlu0 %464
      %466 = vrot.lane.b32.xlu0 %v430, 8
      %v467 = vpop.permute.xlu0 %466
      %468 = vrot.lane.b32.xlu0 %v431, 8
      %v469 = vpop.permute.xlu0 %468
      %470 = vrot.lane.b32.xlu0 %v432, 8
      %v471 = vpop.permute.xlu0 %470
      %472 = vrot.lane.b32.xlu0 %v433, 8
      %v473 = vpop.permute.xlu0 %472
      %474 = vrot.lane.b32.xlu0 %v434, 8
      %v475 = vpop.permute.xlu0 %474
      %476 = vrot.lane.b32.xlu0 %v435, 8
      %v477 = vpop.permute.xlu0 %476
      %478 = vrot.lane.b32.xlu0 %v436, 8
      %v479 = vpop.permute.xlu0 %478
      %480 = vrot.lane.b32.xlu0 %v437, 8
      %v481 = vpop.permute.xlu0 %480
      %482 = vrot.lane.b32.xlu0 %v438, 8
      %v483 = vpop.permute.xlu0 %482
      %484 = vrot.lane.b32.xlu0 %v439, 8
      %v485 = vpop.permute.xlu0 %484
      %486 = vrot.lane.b32.xlu0 %v440, 8
      %v487 = vpop.permute.xlu0 %486
      %488 = vrot.lane.b32.xlu0 %v441, 8
      %v489 = vpop.permute.xlu0 %488
      %vm506 = vcmask 97344
      %507 = vst.msk [vmem:[#allocation2] sm:$0xff] %vm506, %v459
      %508 = vst.msk [vmem:[#allocation2 + $0x8] sm:$0xff] %vm506, %v461
      %509 = vst.msk [vmem:[#allocation2 + $0x10] sm:$0xff] %vm506, %v463
      %510 = vst.msk [vmem:[#allocation2 + $0x18] sm:$0xff] %vm506, %v465
      %511 = vst.msk [vmem:[#allocation2 + $0x20] sm:$0xff] %vm506, %v467
      %512 = vst.msk [vmem:[#allocation2 + $0x28] sm:$0xff] %vm506, %v469
      %513 = vst.msk [vmem:[#allocation2 + $0x30] sm:$0xff] %vm506, %v471
      %514 = vst.msk [vmem:[#allocation2 + $0x38] sm:$0xff] %vm506, %v473
      %515 = vst.msk [vmem:[#allocation2 + $0x40] sm:$0xff] %vm506, %v475
      %516 = vst.msk [vmem:[#allocation2 + $0x48] sm:$0xff] %vm506, %v477
      %517 = vst.msk [vmem:[#allocation2 + $0x50] sm:$0xff] %vm506, %v479
      %518 = vst.msk [vmem:[#allocation2 + $0x58] sm:$0xff] %vm506, %v481
      %519 = vst.msk [vmem:[#allocation2 + $0x60] sm:$0xff] %vm506, %v483
      %520 = vst.msk [vmem:[#allocation2 + $0x68] sm:$0xff] %vm506, %v485
      %521 = vst.msk [vmem:[#allocation2 + $0x70] sm:$0xff] %vm506, %v487
      %522 = vst.msk [vmem:[#allocation2 + $0x78] sm:$0xff] %vm506, %v489
      %s523 = scalar_lea.vmem %s192, 24
      %v524 = vld [vmem:[%s523] sm:$0xff]
      %v525 = vld [vmem:[%s523 + $0x8] sm:$0xff]
      %v526 = vld [vmem:[%s523 + $0x18] sm:$0xff]
      %v527 = vld [vmem:[%s523 + $0x20] sm:$0xff]
      %v528 = vld [vmem:[%s523 + $0x30] sm:$0xff]
      %v529 = vld [vmem:[%s523 + $0x38] sm:$0xff]
      %v530 = vld [vmem:[%s523 + $0x48] sm:$0xff]
      %v531 = vld [vmem:[%s523 + $0x50] sm:$0xff]
      %v532 = vld [vmem:[%s523 + $0x60] sm:$0xff]
      %v533 = vld [vmem:[%s523 + $0x68] sm:$0xff]
      %v534 = vld [vmem:[%s523 + $0x78] sm:$0xff]
      %v535 = vld [vmem:[%s523 + $0x80] sm:$0xff]
      %v536 = vld [vmem:[%s523 + $0x90] sm:$0xff]
      %v537 = vld [vmem:[%s523 + $0x98] sm:$0xff]
      %v538 = vld [vmem:[%s523 + $0xa8] sm:$0xff]
      %v539 = vld [vmem:[%s523 + $0xb0] sm:$0xff]
      %v540 = vld [vmem:[%s523 + $0xc0] sm:$0xff]
      %v541 = vld [vmem:[%s523 + $0xc8] sm:$0xff]
      %v542 = vld [vmem:[%s523 + $0xd8] sm:$0xff]
      %v543 = vld [vmem:[%s523 + $0xe0] sm:$0xff]
      %v544 = vld [vmem:[%s523 + $0xf0] sm:$0xff]
      %v545 = vld [vmem:[%s523 + $0xf8] sm:$0xff]
      %v546 = vld [vmem:[%s523 + $0x108] sm:$0xff]
      %v547 = vld [vmem:[%s523 + $0x110] sm:$0xff]
      %v548 = vld [vmem:[%s523 + $0x120] sm:$0xff]
      %v549 = vld [vmem:[%s523 + $0x128] sm:$0xff]
      %v550 = vld [vmem:[%s523 + $0x138] sm:$0xff]
      %v551 = vld [vmem:[%s523 + $0x140] sm:$0xff]
      %v552 = vld [vmem:[%s523 + $0x150] sm:$0xff]
      %v553 = vld [vmem:[%s523 + $0x158] sm:$0xff]
      %v554 = vld [vmem:[%s523 + $0x168] sm:$0xff]
      %v555 = vld [vmem:[%s523 + $0x170] sm:$0xff]
      %v556 = vpack.c.bf16 %v525, %v524
      %v557 = vpack.c.bf16 %v527, %v526
      %v558 = vpack.c.bf16 %v529, %v528
      %v559 = vpack.c.bf16 %v531, %v530
      %v560 = vpack.c.bf16 %v533, %v532
      %v561 = vpack.c.bf16 %v535, %v534
      %v562 = vpack.c.bf16 %v537, %v536
      %v563 = vpack.c.bf16 %v539, %v538
      %v564 = vpack.c.bf16 %v541, %v540
      %v565 = vpack.c.bf16 %v543, %v542
      %v566 = vpack.c.bf16 %v545, %v544
      %v567 = vpack.c.bf16 %v547, %v546
      %v568 = vpack.c.bf16 %v549, %v548
      %v569 = vpack.c.bf16 %v551, %v550
      %v570 = vpack.c.bf16 %v553, %v552
      %v571 = vpack.c.bf16 %v555, %v554
      %588 = vrot.lane.b32.xlu0 %v556, 12
      %v589 = vpop.permute.xlu0 %588
      %590 = vrot.lane.b32.xlu0 %v557, 12
      %v591 = vpop.permute.xlu0 %590
      %592 = vrot.lane.b32.xlu0 %v558, 12
      %v593 = vpop.permute.xlu0 %592
      %594 = vrot.lane.b32.xlu0 %v559, 12
      %v595 = vpop.permute.xlu0 %594
      %596 = vrot.lane.b32.xlu0 %v560, 12
      %v597 = vpop.permute.xlu0 %596
      %598 = vrot.lane.b32.xlu0 %v561, 12
      %v599 = vpop.permute.xlu0 %598
      %600 = vrot.lane.b32.xlu0 %v562, 12
      %v601 = vpop.permute.xlu0 %600
      %602 = vrot.lane.b32.xlu0 %v563, 12
      %v603 = vpop.permute.xlu0 %602
      %604 = vrot.lane.b32.xlu0 %v564, 12
      %v605 = vpop.permute.xlu0 %604
      %606 = vrot.lane.b32.xlu0 %v565, 12
      %v607 = vpop.permute.xlu0 %606
      %608 = vrot.lane.b32.xlu0 %v566, 12
      %v609 = vpop.permute.xlu0 %608
      %610 = vrot.lane.b32.xlu0 %v567, 12
      %v611 = vpop.permute.xlu0 %610
      %612 = vrot.lane.b32.xlu0 %v568, 12
      %v613 = vpop.permute.xlu0 %612
      %614 = vrot.lane.b32.xlu0 %v569, 12
      %v615 = vpop.permute.xlu0 %614
      %616 = vrot.lane.b32.xlu0 %v570, 12
      %v617 = vpop.permute.xlu0 %616
      %618 = vrot.lane.b32.xlu0 %v571, 12
      %v619 = vpop.permute.xlu0 %618
      %vm636 = vcmask 130144
      %637 = vst.msk [vmem:[#allocation2] sm:$0xff] %vm636, %v589
      %638 = vst.msk [vmem:[#allocation2 + $0x8] sm:$0xff] %vm636, %v591
      %639 = vst.msk [vmem:[#allocation2 + $0x10] sm:$0xff] %vm636, %v593
      %640 = vst.msk [vmem:[#allocation2 + $0x18] sm:$0xff] %vm636, %v595
      %641 = vst.msk [vmem:[#allocation2 + $0x20] sm:$0xff] %vm636, %v597
      %642 = vst.msk [vmem:[#allocation2 + $0x28] sm:$0xff] %vm636, %v599
      %643 = vst.msk [vmem:[#allocation2 + $0x30] sm:$0xff] %vm636, %v601
      %644 = vst.msk [vmem:[#allocation2 + $0x38] sm:$0xff] %vm636, %v603
      %645 = vst.msk [vmem:[#allocation2 + $0x40] sm:$0xff] %vm636, %v605
      %646 = vst.msk [vmem:[#allocation2 + $0x48] sm:$0xff] %vm636, %v607
      %647 = vst.msk [vmem:[#allocation2 + $0x50] sm:$0xff] %vm636, %v609
      %648 = vst.msk [vmem:[#allocation2 + $0x58] sm:$0xff] %vm636, %v611
      %649 = vst.msk [vmem:[#allocation2 + $0x60] sm:$0xff] %vm636, %v613
      %650 = vst.msk [vmem:[#allocation2 + $0x68] sm:$0xff] %vm636, %v615
      %651 = vst.msk [vmem:[#allocation2 + $0x70] sm:$0xff] %vm636, %v617
      %652 = vst.msk [vmem:[#allocation2 + $0x78] sm:$0xff] %vm636, %v619
      %v653 = vld [vmem:[%s523 + $0x1] sm:$0xff]
      %v654 = vld [vmem:[%s523 + $0x9] sm:$0xff]
      %v655 = vld [vmem:[%s523 + $0x19] sm:$0xff]
      %v656 = vld [vmem:[%s523 + $0x21] sm:$0xff]
      %v657 = vld [vmem:[%s523 + $0x31] sm:$0xff]
      %v658 = vld [vmem:[%s523 + $0x39] sm:$0xff]
      %v659 = vld [vmem:[%s523 + $0x49] sm:$0xff]
      %v660 = vld [vmem:[%s523 + $0x51] sm:$0xff]
      %v661 = vld [vmem:[%s523 + $0x61] sm:$0xff]
      %v662 = vld [vmem:[%s523 + $0x69] sm:$0xff]
      %v663 = vld [vmem:[%s523 + $0x79] sm:$0xff]
      %v664 = vld [vmem:[%s523 + $0x81] sm:$0xff]
      %v665 = vld [vmem:[%s523 + $0x91] sm:$0xff]
      %v666 = vld [vmem:[%s523 + $0x99] sm:$0xff]
      %v667 = vld [vmem:[%s523 + $0xa9] sm:$0xff]
      %v668 = vld [vmem:[%s523 + $0xb1] sm:$0xff]
      %v669 = vld [vmem:[%s523 + $0xc1] sm:$0xff]
      %v670 = vld [vmem:[%s523 + $0xc9] sm:$0xff]
      %v671 = vld [vmem:[%s523 + $0xd9] sm:$0xff]
      %v672 = vld [vmem:[%s523 + $0xe1] sm:$0xff]
      %v673 = vld [vmem:[%s523 + $0xf1] sm:$0xff]
      %v674 = vld [vmem:[%s523 + $0xf9] sm:$0xff]
      %v675 = vld [vmem:[%s523 + $0x109] sm:$0xff]
      %v676 = vld [vmem:[%s523 + $0x111] sm:$0xff]
      %v677 = vld [vmem:[%s523 + $0x121] sm:$0xff]
      %v678 = vld [vmem:[%s523 + $0x129] sm:$0xff]
      %v679 = vld [vmem:[%s523 + $0x139] sm:$0xff]
      %v680 = vld [vmem:[%s523 + $0x141] sm:$0xff]
      %v681 = vld [vmem:[%s523 + $0x151] sm:$0xff]
      %v682 = vld [vmem:[%s523 + $0x159] sm:$0xff]
      %v683 = vld [vmem:[%s523 + $0x169] sm:$0xff]
      %v684 = vld [vmem:[%s523 + $0x171] sm:$0xff]
      %v685 = vpack.c.bf16 %v654, %v653
      %v686 = vpack.c.bf16 %v656, %v655
      %v687 = vpack.c.bf16 %v658, %v657
      %v688 = vpack.c.bf16 %v660, %v659
      %v689 = vpack.c.bf16 %v662, %v661
      %v690 = vpack.c.bf16 %v664, %v663
      %v691 = vpack.c.bf16 %v666, %v665
      %v692 = vpack.c.bf16 %v668, %v667
      %v693 = vpack.c.bf16 %v670, %v669
      %v694 = vpack.c.bf16 %v672, %v671
      %v695 = vpack.c.bf16 %v674, %v673
      %v696 = vpack.c.bf16 %v676, %v675
      %v697 = vpack.c.bf16 %v678, %v677
      %v698 = vpack.c.bf16 %v680, %v679
      %v699 = vpack.c.bf16 %v682, %v681
      %v700 = vpack.c.bf16 %v684, %v683
      %717 = vrot.lane.b32.xlu0 %v685, 16
      %v718 = vpop.permute.xlu0 %717
      %719 = vrot.lane.b32.xlu0 %v686, 16
      %v720 = vpop.permute.xlu0 %719
      %721 = vrot.lane.b32.xlu0 %v687, 16
      %v722 = vpop.permute.xlu0 %721
      %723 = vrot.lane.b32.xlu0 %v688, 16
      %v724 = vpop.permute.xlu0 %723
      %725 = vrot.lane.b32.xlu0 %v689, 16
      %v726 = vpop.permute.xlu0 %725
      %727 = vrot.lane.b32.xlu0 %v690, 16
      %v728 = vpop.permute.xlu0 %727
      %729 = vrot.lane.b32.xlu0 %v691, 16
      %v730 = vpop.permute.xlu0 %729
      %731 = vrot.lane.b32.xlu0 %v692, 16
      %v732 = vpop.permute.xlu0 %731
      %733 = vrot.lane.b32.xlu0 %v693, 16
      %v734 = vpop.permute.xlu0 %733
      %735 = vrot.lane.b32.xlu0 %v694, 16
      %v736 = vpop.permute.xlu0 %735
      %737 = vrot.lane.b32.xlu0 %v695, 16
      %v738 = vpop.permute.xlu0 %737
      %739 = vrot.lane.b32.xlu0 %v696, 16
      %v740 = vpop.permute.xlu0 %739
      %741 = vrot.lane.b32.xlu0 %v697, 16
      %v742 = vpop.permute.xlu0 %741
      %743 = vrot.lane.b32.xlu0 %v698, 16
      %v744 = vpop.permute.xlu0 %743
      %745 = vrot.lane.b32.xlu0 %v699, 16
      %v746 = vpop.permute.xlu0 %745
      %747 = vrot.lane.b32.xlu0 %v700, 16
      %v748 = vpop.permute.xlu0 %747
      %vm765 = vcmask 162944
      %766 = vst.msk [vmem:[#allocation2] sm:$0xff] %vm765, %v718
      %767 = vst.msk [vmem:[#allocation2 + $0x8] sm:$0xff] %vm765, %v720
      %768 = vst.msk [vmem:[#allocation2 + $0x10] sm:$0xff] %vm765, %v722
      %769 = vst.msk [vmem:[#allocation2 + $0x18] sm:$0xff] %vm765, %v724
      %770 = vst.msk [vmem:[#allocation2 + $0x20] sm:$0xff] %vm765, %v726
      %771 = vst.msk [vmem:[#allocation2 + $0x28] sm:$0xff] %vm765, %v728
      %772 = vst.msk [vmem:[#allocation2 + $0x30] sm:$0xff] %vm765, %v730
      %773 = vst.msk [vmem:[#allocation2 + $0x38] sm:$0xff] %vm765, %v732
      %774 = vst.msk [vmem:[#allocation2 + $0x40] sm:$0xff] %vm765, %v734
      %775 = vst.msk [vmem:[#allocation2 + $0x48] sm:$0xff] %vm765, %v736
      %776 = vst.msk [vmem:[#allocation2 + $0x50] sm:$0xff] %vm765, %v738
      %777 = vst.msk [vmem:[#allocation2 + $0x58] sm:$0xff] %vm765, %v740
      %778 = vst.msk [vmem:[#allocation2 + $0x60] sm:$0xff] %vm765, %v742
      %779 = vst.msk [vmem:[#allocation2 + $0x68] sm:$0xff] %vm765, %v744
      %780 = vst.msk [vmem:[#allocation2 + $0x70] sm:$0xff] %vm765, %v746
      %781 = vst.msk [vmem:[#allocation2 + $0x78] sm:$0xff] %vm765, %v748
      %v782 = vld [vmem:[%s523 + $0x2] sm:$0xff]
      %v783 = vld [vmem:[%s523 + $0xa] sm:$0xff]
      %v784 = vld [vmem:[%s523 + $0x1a] sm:$0xff]
      %v785 = vld [vmem:[%s523 + $0x22] sm:$0xff]
      %v786 = vld [vmem:[%s523 + $0x32] sm:$0xff]
      %v787 = vld [vmem:[%s523 + $0x3a] sm:$0xff]
      %v788 = vld [vmem:[%s523 + $0x4a] sm:$0xff]
      %v789 = vld [vmem:[%s523 + $0x52] sm:$0xff]
      %v790 = vld [vmem:[%s523 + $0x62] sm:$0xff]
      %v791 = vld [vmem:[%s523 + $0x6a] sm:$0xff]
      %v792 = vld [vmem:[%s523 + $0x7a] sm:$0xff]
      %v793 = vld [vmem:[%s523 + $0x82] sm:$0xff]
      %v794 = vld [vmem:[%s523 + $0x92] sm:$0xff]
      %v795 = vld [vmem:[%s523 + $0x9a] sm:$0xff]
      %v796 = vld [vmem:[%s523 + $0xaa] sm:$0xff]
      %v797 = vld [vmem:[%s523 + $0xb2] sm:$0xff]
      %v798 = vld [vmem:[%s523 + $0xc2] sm:$0xff]
      %v799 = vld [vmem:[%s523 + $0xca] sm:$0xff]
      %v800 = vld [vmem:[%s523 + $0xda] sm:$0xff]
      %v801 = vld [vmem:[%s523 + $0xe2] sm:$0xff]
      %v802 = vld [vmem:[%s523 + $0xf2] sm:$0xff]
      %v803 = vld [vmem:[%s523 + $0xfa] sm:$0xff]
      %v804 = vld [vmem:[%s523 + $0x10a] sm:$0xff]
      %v805 = vld [vmem:[%s523 + $0x112] sm:$0xff]
      %v806 = vld [vmem:[%s523 + $0x122] sm:$0xff]
      %v807 = vld [vmem:[%s523 + $0x12a] sm:$0xff]
      %v808 = vld [vmem:[%s523 + $0x13a] sm:$0xff]
      %v809 = vld [vmem:[%s523 + $0x142] sm:$0xff]
      %v810 = vld [vmem:[%s523 + $0x152] sm:$0xff]
      %v811 = vld [vmem:[%s523 + $0x15a] sm:$0xff]
      %v812 = vld [vmem:[%s523 + $0x16a] sm:$0xff]
      %v813 = vld [vmem:[%s523 + $0x172] sm:$0xff]
      %v814 = vpack.c.bf16 %v783, %v782
      %v815 = vpack.c.bf16 %v785, %v784
      %v816 = vpack.c.bf16 %v787, %v786
      %v817 = vpack.c.bf16 %v789, %v788
      %v818 = vpack.c.bf16 %v791, %v790
      %v819 = vpack.c.bf16 %v793, %v792
      %v820 = vpack.c.bf16 %v795, %v794
      %v821 = vpack.c.bf16 %v797, %v796
      %v822 = vpack.c.bf16 %v799, %v798
      %v823 = vpack.c.bf16 %v801, %v800
      %v824 = vpack.c.bf16 %v803, %v802
      %v825 = vpack.c.bf16 %v805, %v804
      %v826 = vpack.c.bf16 %v807, %v806
      %v827 = vpack.c.bf16 %v809, %v808
      %v828 = vpack.c.bf16 %v811, %v810
      %v829 = vpack.c.bf16 %v813, %v812
      %846 = vrot.lane.b32.xlu0 %v814, 20
      %v847 = vpop.permute.xlu0 %846
      %848 = vrot.lane.b32.xlu0 %v815, 20
      %v849 = vpop.permute.xlu0 %848
      %850 = vrot.lane.b32.xlu0 %v816, 20
      %v851 = vpop.permute.xlu0 %850
      %852 = vrot.lane.b32.xlu0 %v817, 20
      %v853 = vpop.permute.xlu0 %852
      %854 = vrot.lane.b32.xlu0 %v818, 20
      %v855 = vpop.permute.xlu0 %854
      %856 = vrot.lane.b32.xlu0 %v819, 20
      %v857 = vpop.permute.xlu0 %856
      %858 = vrot.lane.b32.xlu0 %v820, 20
      %v859 = vpop.permute.xlu0 %858
      %860 = vrot.lane.b32.xlu0 %v821, 20
      %v861 = vpop.permute.xlu0 %860
      %862 = vrot.lane.b32.xlu0 %v822, 20
      %v863 = vpop.permute.xlu0 %862
      %864 = vrot.lane.b32.xlu0 %v823, 20
      %v865 = vpop.permute.xlu0 %864
      %866 = vrot.lane.b32.xlu0 %v824, 20
      %v867 = vpop.permute.xlu0 %866
      %868 = vrot.lane.b32.xlu0 %v825, 20
      %v869 = vpop.permute.xlu0 %868
      %870 = vrot.lane.b32.xlu0 %v826, 20
      %v871 = vpop.permute.xlu0 %870
      %872 = vrot.lane.b32.xlu0 %v827, 20
      %v873 = vpop.permute.xlu0 %872
      %874 = vrot.lane.b32.xlu0 %v828, 20
      %v875 = vpop.permute.xlu0 %874
      %876 = vrot.lane.b32.xlu0 %v829, 20
      %v877 = vpop.permute.xlu0 %876
      %vm894 = vcmask 195744
      %895 = vst.msk [vmem:[#allocation2] sm:$0xff] %vm894, %v847
      %896 = vst.msk [vmem:[#allocation2 + $0x8] sm:$0xff] %vm894, %v849
      %897 = vst.msk [vmem:[#allocation2 + $0x10] sm:$0xff] %vm894, %v851
      %898 = vst.msk [vmem:[#allocation2 + $0x18] sm:$0xff] %vm894, %v853
      %899 = vst.msk [vmem:[#allocation2 + $0x20] sm:$0xff] %vm894, %v855
      %900 = vst.msk [vmem:[#allocation2 + $0x28] sm:$0xff] %vm894, %v857
      %901 = vst.msk [vmem:[#allocation2 + $0x30] sm:$0xff] %vm894, %v859
      %902 = vst.msk [vmem:[#allocation2 + $0x38] sm:$0xff] %vm894, %v861
      %903 = vst.msk [vmem:[#allocation2 + $0x40] sm:$0xff] %vm894, %v863
      %904 = vst.msk [vmem:[#allocation2 + $0x48] sm:$0xff] %vm894, %v865
      %905 = vst.msk [vmem:[#allocation2 + $0x50] sm:$0xff] %vm894, %v867
      %906 = vst.msk [vmem:[#allocation2 + $0x58] sm:$0xff] %vm894, %v869
      %907 = vst.msk [vmem:[#allocation2 + $0x60] sm:$0xff] %vm894, %v871
      %908 = vst.msk [vmem:[#allocation2 + $0x68] sm:$0xff] %vm894, %v873
      %909 = vst.msk [vmem:[#allocation2 + $0x70] sm:$0xff] %vm894, %v875
      %910 = vst.msk [vmem:[#allocation2 + $0x78] sm:$0xff] %vm894, %v877
      %s911 = scalar_lea.vmem %s192, 48
      %v912 = vld [vmem:[%s911] sm:$0xff]
      %v913 = vld [vmem:[%s911 + $0x8] sm:$0xff]
      %v914 = vld [vmem:[%s911 + $0x18] sm:$0xff]
      %v915 = vld [vmem:[%s911 + $0x20] sm:$0xff]
      %v916 = vld [vmem:[%s911 + $0x30] sm:$0xff]
      %v917 = vld [vmem:[%s911 + $0x38] sm:$0xff]
      %v918 = vld [vmem:[%s911 + $0x48] sm:$0xff]
      %v919 = vld [vmem:[%s911 + $0x50] sm:$0xff]
      %v920 = vld [vmem:[%s911 + $0x60] sm:$0xff]
      %v921 = vld [vmem:[%s911 + $0x68] sm:$0xff]
      %v922 = vld [vmem:[%s911 + $0x78] sm:$0xff]
      %v923 = vld [vmem:[%s911 + $0x80] sm:$0xff]
      %v924 = vld [vmem:[%s911 + $0x90] sm:$0xff]
      %v925 = vld [vmem:[%s911 + $0x98] sm:$0xff]
      %v926 = vld [vmem:[%s911 + $0xa8] sm:$0xff]
      %v927 = vld [vmem:[%s911 + $0xb0] sm:$0xff]
      %v928 = vld [vmem:[%s911 + $0xc0] sm:$0xff]
      %v929 = vld [vmem:[%s911 + $0xc8] sm:$0xff]
      %v930 = vld [vmem:[%s911 + $0xd8] sm:$0xff]
      %v931 = vld [vmem:[%s911 + $0xe0] sm:$0xff]
      %v932 = vld [vmem:[%s911 + $0xf0] sm:$0xff]
      %v933 = vld [vmem:[%s911 + $0xf8] sm:$0xff]
      %v934 = vld [vmem:[%s911 + $0x108] sm:$0xff]
      %v935 = vld [vmem:[%s911 + $0x110] sm:$0xff]
      %v936 = vld [vmem:[%s911 + $0x120] sm:$0xff]
      %v937 = vld [vmem:[%s911 + $0x128] sm:$0xff]
      %v938 = vld [vmem:[%s911 + $0x138] sm:$0xff]
      %v939 = vld [vmem:[%s911 + $0x140] sm:$0xff]
      %v940 = vld [vmem:[%s911 + $0x150] sm:$0xff]
      %v941 = vld [vmem:[%s911 + $0x158] sm:$0xff]
      %v942 = vld [vmem:[%s911 + $0x168] sm:$0xff]
      %v943 = vld [vmem:[%s911 + $0x170] sm:$0xff]
      %v944 = vpack.c.bf16 %v913, %v912
      %v945 = vpack.c.bf16 %v915, %v914
      %v946 = vpack.c.bf16 %v917, %v916
      %v947 = vpack.c.bf16 %v919, %v918
      %v948 = vpack.c.bf16 %v921, %v920
      %v949 = vpack.c.bf16 %v923, %v922
      %v950 = vpack.c.bf16 %v925, %v924
      %v951 = vpack.c.bf16 %v927, %v926
      %v952 = vpack.c.bf16 %v929, %v928
      %v953 = vpack.c.bf16 %v931, %v930
      %v954 = vpack.c.bf16 %v933, %v932
      %v955 = vpack.c.bf16 %v935, %v934
      %v956 = vpack.c.bf16 %v937, %v936
      %v957 = vpack.c.bf16 %v939, %v938
      %v958 = vpack.c.bf16 %v941, %v940
      %v959 = vpack.c.bf16 %v943, %v942
      %976 = vrot.lane.b32.xlu0 %v944, 24
      %v977 = vpop.permute.xlu0 %976
      %978 = vrot.lane.b32.xlu0 %v945, 24
      %v979 = vpop.permute.xlu0 %978
      %980 = vrot.lane.b32.xlu0 %v946, 24
      %v981 = vpop.permute.xlu0 %980
      %982 = vrot.lane.b32.xlu0 %v947, 24
      %v983 = vpop.permute.xlu0 %982
      %984 = vrot.lane.b32.xlu0 %v948, 24
      %v985 = vpop.permute.xlu0 %984
      %986 = vrot.lane.b32.xlu0 %v949, 24
      %v987 = vpop.permute.xlu0 %986
      %988 = vrot.lane.b32.xlu0 %v950, 24
      %v989 = vpop.permute.xlu0 %988
      %990 = vrot.lane.b32.xlu0 %v951, 24
      %v991 = vpop.permute.xlu0 %990
      %992 = vrot.lane.b32.xlu0 %v952, 24
      %v993 = vpop.permute.xlu0 %992
      %994 = vrot.lane.b32.xlu0 %v953, 24
      %v995 = vpop.permute.xlu0 %994
      %996 = vrot.lane.b32.xlu0 %v954, 24
      %v997 = vpop.permute.xlu0 %996
      %998 = vrot.lane.b32.xlu0 %v955, 24
      %v999 = vpop.permute.xlu0 %998
      %1000 = vrot.lane.b32.xlu0 %v956, 24
      %v1001 = vpop.permute.xlu0 %1000
      %1002 = vrot.lane.b32.xlu0 %v957, 24
      %v1003 = vpop.permute.xlu0 %1002
      %1004 = vrot.lane.b32.xlu0 %v958, 24
      %v1005 = vpop.permute.xlu0 %1004
      %1006 = vrot.lane.b32.xlu0 %v959, 24
      %v1007 = vpop.permute.xlu0 %1006
      %vm1024 = vcmask 228544
      %1025 = vst.msk [vmem:[#allocation2] sm:$0xff] %vm1024, %v977
      %1026 = vst.msk [vmem:[#allocation2 + $0x8] sm:$0xff] %vm1024, %v979
      %1027 = vst.msk [vmem:[#allocation2 + $0x10] sm:$0xff] %vm1024, %v981
      %1028 = vst.msk [vmem:[#allocation2 + $0x18] sm:$0xff] %vm1024, %v983
      %1029 = vst.msk [vmem:[#allocation2 + $0x20] sm:$0xff] %vm1024, %v985
      %1030 = vst.msk [vmem:[#allocation2 + $0x28] sm:$0xff] %vm1024, %v987
      %1031 = vst.msk [vmem:[#allocation2 + $0x30] sm:$0xff] %vm1024, %v989
      %1032 = vst.msk [vmem:[#allocation2 + $0x38] sm:$0xff] %vm1024, %v991
      %1033 = vst.msk [vmem:[#allocation2 + $0x40] sm:$0xff] %vm1024, %v993
      %1034 = vst.msk [vmem:[#allocation2 + $0x48] sm:$0xff] %vm1024, %v995
      %1035 = vst.msk [vmem:[#allocation2 + $0x50] sm:$0xff] %vm1024, %v997
      %1036 = vst.msk [vmem:[#allocation2 + $0x58] sm:$0xff] %vm1024, %v999
      %1037 = vst.msk [vmem:[#allocation2 + $0x60] sm:$0xff] %vm1024, %v1001
      %1038 = vst.msk [vmem:[#allocation2 + $0x68] sm:$0xff] %vm1024, %v1003
      %1039 = vst.msk [vmem:[#allocation2 + $0x70] sm:$0xff] %vm1024, %v1005
      %1040 = vst.msk [vmem:[#allocation2 + $0x78] sm:$0xff] %vm1024, %v1007
      %v1041 = vld [vmem:[%s911 + $0x1] sm:$0xff]
      %v1042 = vld [vmem:[%s911 + $0x9] sm:$0xff]
      %v1043 = vld [vmem:[%s911 + $0x19] sm:$0xff]
      %v1044 = vld [vmem:[%s911 + $0x21] sm:$0xff]
      %v1045 = vld [vmem:[%s911 + $0x31] sm:$0xff]
      %v1046 = vld [vmem:[%s911 + $0x39] sm:$0xff]
      %v1047 = vld [vmem:[%s911 + $0x49] sm:$0xff]
      %v1048 = vld [vmem:[%s911 + $0x51] sm:$0xff]
      %v1049 = vld [vmem:[%s911 + $0x61] sm:$0xff]
      %v1050 = vld [vmem:[%s911 + $0x69] sm:$0xff]
      %v1051 = vld [vmem:[%s911 + $0x79] sm:$0xff]
      %v1052 = vld [vmem:[%s911 + $0x81] sm:$0xff]
      %v1053 = vld [vmem:[%s911 + $0x91] sm:$0xff]
      %v1054 = vld [vmem:[%s911 + $0x99] sm:$0xff]
      %v1055 = vld [vmem:[%s911 + $0xa9] sm:$0xff]
      %v1056 = vld [vmem:[%s911 + $0xb1] sm:$0xff]
      %v1057 = vld [vmem:[%s911 + $0xc1] sm:$0xff]
      %v1058 = vld [vmem:[%s911 + $0xc9] sm:$0xff]
      %v1059 = vld [vmem:[%s911 + $0xd9] sm:$0xff]
      %v1060 = vld [vmem:[%s911 + $0xe1] sm:$0xff]
      %v1061 = vld [vmem:[%s911 + $0xf1] sm:$0xff]
      %v1062 = vld [vmem:[%s911 + $0xf9] sm:$0xff]
      %v1063 = vld [vmem:[%s911 + $0x109] sm:$0xff]
      %v1064 = vld [vmem:[%s911 + $0x111] sm:$0xff]
      %v1065 = vld [vmem:[%s911 + $0x121] sm:$0xff]
      %v1066 = vld [vmem:[%s911 + $0x129] sm:$0xff]
      %v1067 = vld [vmem:[%s911 + $0x139] sm:$0xff]
      %v1068 = vld [vmem:[%s911 + $0x141] sm:$0xff]
      %v1069 = vld [vmem:[%s911 + $0x151] sm:$0xff]
      %v1070 = vld [vmem:[%s911 + $0x159] sm:$0xff]
      %v1071 = vld [vmem:[%s911 + $0x169] sm:$0xff]
      %v1072 = vld [vmem:[%s911 + $0x171] sm:$0xff]
      %v1073 = vpack.c.bf16 %v1042, %v1041
      %v1074 = vpack.c.bf16 %v1044, %v1043
      %v1075 = vpack.c.bf16 %v1046, %v1045
      %v1076 = vpack.c.bf16 %v1048, %v1047
      %v1077 = vpack.c.bf16 %v1050, %v1049
      %v1078 = vpack.c.bf16 %v1052, %v1051
      %v1079 = vpack.c.bf16 %v1054, %v1053
      %v1080 = vpack.c.bf16 %v1056, %v1055
      %v1081 = vpack.c.bf16 %v1058, %v1057
      %v1082 = vpack.c.bf16 %v1060, %v1059
      %v1083 = vpack.c.bf16 %v1062, %v1061
      %v1084 = vpack.c.bf16 %v1064, %v1063
      %v1085 = vpack.c.bf16 %v1066, %v1065
      %v1086 = vpack.c.bf16 %v1068, %v1067
      %v1087 = vpack.c.bf16 %v1070, %v1069
      %v1088 = vpack.c.bf16 %v1072, %v1071
      %1105 = vrot.lane.b32.xlu0 %v1073, 28
      %v1106 = vpop.permute.xlu0 %1105
      %1107 = vrot.lane.b32.xlu0 %v1074, 28
      %v1108 = vpop.permute.xlu0 %1107
      %1109 = vrot.lane.b32.xlu0 %v1075, 28
      %v1110 = vpop.permute.xlu0 %1109
      %1111 = vrot.lane.b32.xlu0 %v1076, 28
      %v1112 = vpop.permute.xlu0 %1111
      %1113 = vrot.lane.b32.xlu0 %v1077, 28
      %v1114 = vpop.permute.xlu0 %1113
      %1115 = vrot.lane.b32.xlu0 %v1078, 28
      %v1116 = vpop.permute.xlu0 %1115
      %1117 = vrot.lane.b32.xlu0 %v1079, 28
      %v1118 = vpop.permute.xlu0 %1117
      %1119 = vrot.lane.b32.xlu0 %v1080, 28
      %v1120 = vpop.permute.xlu0 %1119
      %1121 = vrot.lane.b32.xlu0 %v1081, 28
      %v1122 = vpop.permute.xlu0 %1121
      %1123 = vrot.lane.b32.xlu0 %v1082, 28
      %v1124 = vpop.permute.xlu0 %1123
      %1125 = vrot.lane.b32.xlu0 %v1083, 28
      %v1126 = vpop.permute.xlu0 %1125
      %1127 = vrot.lane.b32.xlu0 %v1084, 28
      %v1128 = vpop.permute.xlu0 %1127
      %1129 = vrot.lane.b32.xlu0 %v1085, 28
      %v1130 = vpop.permute.xlu0 %1129
      %1131 = vrot.lane.b32.xlu0 %v1086, 28
      %v1132 = vpop.permute.xlu0 %1131
      %1133 = vrot.lane.b32.xlu0 %v1087, 28
      %v1134 = vpop.permute.xlu0 %1133
      %1135 = vrot.lane.b32.xlu0 %v1088, 28
      %v1136 = vpop.permute.xlu0 %1135
      %vm1153 = vcmask 261344
      %1154 = vst.msk [vmem:[#allocation2] sm:$0xff] %vm1153, %v1106
      %1155 = vst.msk [vmem:[#allocation2 + $0x8] sm:$0xff] %vm1153, %v1108
      %1156 = vst.msk [vmem:[#allocation2 + $0x10] sm:$0xff] %vm1153, %v1110
      %1157 = vst.msk [vmem:[#allocation2 + $0x18] sm:$0xff] %vm1153, %v1112
      %1158 = vst.msk [vmem:[#allocation2 + $0x20] sm:$0xff] %vm1153, %v1114
      %1159 = vst.msk [vmem:[#allocation2 + $0x28] sm:$0xff] %vm1153, %v1116
      %1160 = vst.msk [vmem:[#allocation2 + $0x30] sm:$0xff] %vm1153, %v1118
      %1161 = vst.msk [vmem:[#allocation2 + $0x38] sm:$0xff] %vm1153, %v1120
      %1162 = vst.msk [vmem:[#allocation2 + $0x40] sm:$0xff] %vm1153, %v1122
      %1163 = vst.msk [vmem:[#allocation2 + $0x48] sm:$0xff] %vm1153, %v1124
      %1164 = vst.msk [vmem:[#allocation2 + $0x50] sm:$0xff] %vm1153, %v1126
      %1165 = vst.msk [vmem:[#allocation2 + $0x58] sm:$0xff] %vm1153, %v1128
      %1166 = vst.msk [vmem:[#allocation2 + $0x60] sm:$0xff] %vm1153, %v1130
      %1167 = vst.msk [vmem:[#allocation2 + $0x68] sm:$0xff] %vm1153, %v1132
      %1168 = vst.msk [vmem:[#allocation2 + $0x70] sm:$0xff] %vm1153, %v1134
      %1169 = vst.msk [vmem:[#allocation2 + $0x78] sm:$0xff] %vm1153, %v1136
      %v1170 = vld [vmem:[%s911 + $0x2] sm:$0xff]
      %v1171 = vld [vmem:[%s911 + $0xa] sm:$0xff]
      %v1172 = vld [vmem:[%s911 + $0x1a] sm:$0xff]
      %v1173 = vld [vmem:[%s911 + $0x22] sm:$0xff]
      %v1174 = vld [vmem:[%s911 + $0x32] sm:$0xff]
      %v1175 = vld [vmem:[%s911 + $0x3a] sm:$0xff]
      %v1176 = vld [vmem:[%s911 + $0x4a] sm:$0xff]
      %v1177 = vld [vmem:[%s911 + $0x52] sm:$0xff]
      %v1178 = vld [vmem:[%s911 + $0x62] sm:$0xff]
      %v1179 = vld [vmem:[%s911 + $0x6a] sm:$0xff]
      %v1180 = vld [vmem:[%s911 + $0x7a] sm:$0xff]
      %v1181 = vld [vmem:[%s911 + $0x82] sm:$0xff]
      %v1182 = vld [vmem:[%s911 + $0x92] sm:$0xff]
      %v1183 = vld [vmem:[%s911 + $0x9a] sm:$0xff]
      %v1184 = vld [vmem:[%s911 + $0xaa] sm:$0xff]
      %v1185 = vld [vmem:[%s911 + $0xb2] sm:$0xff]
      %v1186 = vld [vmem:[%s911 + $0xc2] sm:$0xff]
      %v1187 = vld [vmem:[%s911 + $0xca] sm:$0xff]
      %v1188 = vld [vmem:[%s911 + $0xda] sm:$0xff]
      %v1189 = vld [vmem:[%s911 + $0xe2] sm:$0xff]
      %v1190 = vld [vmem:[%s911 + $0xf2] sm:$0xff]
      %v1191 = vld [vmem:[%s911 + $0xfa] sm:$0xff]
      %v1192 = vld [vmem:[%s911 + $0x10a] sm:$0xff]
      %v1193 = vld [vmem:[%s911 + $0x112] sm:$0xff]
      %v1194 = vld [vmem:[%s911 + $0x122] sm:$0xff]
      %v1195 = vld [vmem:[%s911 + $0x12a] sm:$0xff]
      %v1196 = vld [vmem:[%s911 + $0x13a] sm:$0xff]
      %v1197 = vld [vmem:[%s911 + $0x142] sm:$0xff]
      %v1198 = vld [vmem:[%s911 + $0x152] sm:$0xff]
      %v1199 = vld [vmem:[%s911 + $0x15a] sm:$0xff]
      %v1200 = vld [vmem:[%s911 + $0x16a] sm:$0xff]
      %v1201 = vld [vmem:[%s911 + $0x172] sm:$0xff]
      %v1202 = vpack.c.bf16 %v1171, %v1170
      %v1203 = vpack.c.bf16 %v1173, %v1172
      %v1204 = vpack.c.bf16 %v1175, %v1174
      %v1205 = vpack.c.bf16 %v1177, %v1176
      %v1206 = vpack.c.bf16 %v1179, %v1178
      %v1207 = vpack.c.bf16 %v1181, %v1180
      %v1208 = vpack.c.bf16 %v1183, %v1182
      %v1209 = vpack.c.bf16 %v1185, %v1184
      %v1210 = vpack.c.bf16 %v1187, %v1186
      %v1211 = vpack.c.bf16 %v1189, %v1188
      %v1212 = vpack.c.bf16 %v1191, %v1190
      %v1213 = vpack.c.bf16 %v1193, %v1192
      %v1214 = vpack.c.bf16 %v1195, %v1194
      %v1215 = vpack.c.bf16 %v1197, %v1196
      %v1216 = vpack.c.bf16 %v1199, %v1198
      %v1217 = vpack.c.bf16 %v1201, %v1200
      %1234 = vrot.lane.b32.xlu0 %v1202, 32
      %v1235 = vpop.permute.xlu0 %1234
      %1236 = vrot.lane.b32.xlu0 %v1203, 32
      %v1237 = vpop.permute.xlu0 %1236
      %1238 = vrot.lane.b32.xlu0 %v1204, 32
      %v1239 = vpop.permute.xlu0 %1238
      %1240 = vrot.lane.b32.xlu0 %v1205, 32
      %v1241 = vpop.permute.xlu0 %1240
      %1242 = vrot.lane.b32.xlu0 %v1206, 32
      %v1243 = vpop.permute.xlu0 %1242
      %1244 = vrot.lane.b32.xlu0 %v1207, 32
      %v1245 = vpop.permute.xlu0 %1244
      %1246 = vrot.lane.b32.xlu0 %v1208, 32
      %v1247 = vpop.permute.xlu0 %1246
      %1248 = vrot.lane.b32.xlu0 %v1209, 32
      %v1249 = vpop.permute.xlu0 %1248
      %1250 = vrot.lane.b32.xlu0 %v1210, 32
      %v1251 = vpop.permute.xlu0 %1250
      %1252 = vrot.lane.b32.xlu0 %v1211, 32
      %v1253 = vpop.permute.xlu0 %1252
      %1254 = vrot.lane.b32.xlu0 %v1212, 32
      %v1255 = vpop.permute.xlu0 %1254
      %1256 = vrot.lane.b32.xlu0 %v1213, 32
      %v1257 = vpop.permute.xlu0 %1256
      %1258 = vrot.lane.b32.xlu0 %v1214, 32
      %v1259 = vpop.permute.xlu0 %1258
      %1260 = vrot.lane.b32.xlu0 %v1215, 32
      %v1261 = vpop.permute.xlu0 %1260
      %1262 = vrot.lane.b32.xlu0 %v1216, 32
      %v1263 = vpop.permute.xlu0 %1262
      %1264 = vrot.lane.b32.xlu0 %v1217, 32
      %v1265 = vpop.permute.xlu0 %1264
      %vm1282 = vcmask 294144
      %1283 = vst.msk [vmem:[#allocation2] sm:$0xff] %vm1282, %v1235
      %1284 = vst.msk [vmem:[#allocation2 + $0x8] sm:$0xff] %vm1282, %v1237
      %1285 = vst.msk [vmem:[#allocation2 + $0x10] sm:$0xff] %vm1282, %v1239
      %1286 = vst.msk [vmem:[#allocation2 + $0x18] sm:$0xff] %vm1282, %v1241
      %1287 = vst.msk [vmem:[#allocation2 + $0x20] sm:$0xff] %vm1282, %v1243
      %1288 = vst.msk [vmem:[#allocation2 + $0x28] sm:$0xff] %vm1282, %v1245
      %1289 = vst.msk [vmem:[#allocation2 + $0x30] sm:$0xff] %vm1282, %v1247
      %1290 = vst.msk [vmem:[#allocation2 + $0x38] sm:$0xff] %vm1282, %v1249
      %1291 = vst.msk [vmem:[#allocation2 + $0x40] sm:$0xff] %vm1282, %v1251
      %1292 = vst.msk [vmem:[#allocation2 + $0x48] sm:$0xff] %vm1282, %v1253
      %1293 = vst.msk [vmem:[#allocation2 + $0x50] sm:$0xff] %vm1282, %v1255
      %1294 = vst.msk [vmem:[#allocation2 + $0x58] sm:$0xff] %vm1282, %v1257
      %1295 = vst.msk [vmem:[#allocation2 + $0x60] sm:$0xff] %vm1282, %v1259
      %1296 = vst.msk [vmem:[#allocation2 + $0x68] sm:$0xff] %vm1282, %v1261
      %1297 = vst.msk [vmem:[#allocation2 + $0x70] sm:$0xff] %vm1282, %v1263
      %1298 = vst.msk [vmem:[#allocation2 + $0x78] sm:$0xff] %vm1282, %v1265
      %v1299 = vld [vmem:[#allocation2] sm:$0xff]
      %v1300 = vld [vmem:[#allocation2 + $0x8] sm:$0xff]
      %v1301 = vld [vmem:[#allocation2 + $0x10] sm:$0xff]
      %v1302 = vld [vmem:[#allocation2 + $0x18] sm:$0xff]
      %v1303 = vld [vmem:[#allocation2 + $0x20] sm:$0xff]
      %v1304 = vld [vmem:[#allocation2 + $0x28] sm:$0xff]
      %v1305 = vld [vmem:[#allocation2 + $0x30] sm:$0xff]
      %v1306 = vld [vmem:[#allocation2 + $0x38] sm:$0xff]
      %v1307 = vld [vmem:[#allocation2 + $0x40] sm:$0xff]
      %v1308 = vld [vmem:[#allocation2 + $0x48] sm:$0xff]
      %v1309 = vld [vmem:[#allocation2 + $0x50] sm:$0xff]
      %v1310 = vld [vmem:[#allocation2 + $0x58] sm:$0xff]
      %v1311 = vld [vmem:[#allocation2 + $0x60] sm:$0xff]
      %v1312 = vld [vmem:[#allocation2 + $0x68] sm:$0xff]
      %v1313 = vld [vmem:[#allocation2 + $0x70] sm:$0xff]
      %v1314 = vld [vmem:[#allocation2 + $0x78] sm:$0xff]
      %v1315 = vld [vmem:[%s1] sm:$0xf]
      %v1316 = vld [vmem:[%s1 + $0x4] sm:$0xf]
      %v1317 = vld [vmem:[%s1 + $0x8] sm:$0xf]
      %v1318 = vld [vmem:[%s1 + $0xc] sm:$0xf]
      %v1319 = vld [vmem:[%s1 + $0x10] sm:$0x3]
      %v1320 = vld [vmem:[%s2] sm:$0x1]
      %v1322 = vlaneseq
      %v1323 = vshrl.u32 %v1322, 7
      %v1324 = vsub.s32 0, %v1323
      %v1325 = vrot.slane %v1320, %v1324
      %v1332 = vunpack.c.l.b16 %v1315
      %v1333 = vunpack.c.l.b16 %v1316
      %v1334 = vunpack.c.l.b16 %v1317
      %v1335 = vunpack.c.l.b16 %v1318
      %v1336 = vunpack.c.l.b16 %v1319
      %v1337 = vpack.c.b16 %v1333, %v1332
      %v1338 = vpack.c.b16 %v1335, %v1334
      %v1339 = vpack.c.b16 %v1336, %v1336
      %vm1342 = vcmask 293888
      %v1344 = vsel %vm1342, %v1299, 0
      %v1347 = vsel %vm1342, %v1300, 0
      %v1350 = vsel %vm1342, %v1301, 0
      %v1353 = vsel %vm1342, %v1302, 0
      %v1356 = vsel %vm1342, %v1303, 0
      %v1359 = vsel %vm1342, %v1304, 0
      %v1362 = vsel %vm1342, %v1305, 0
      %v1365 = vsel %vm1342, %v1306, 0
      %v1368 = vsel %vm1342, %v1307, 0
      %v1371 = vsel %vm1342, %v1308, 0
      %v1374 = vsel %vm1342, %v1309, 0
      %v1377 = vsel %vm1342, %v1310, 0
      %v1380 = vsel %vm1342, %v1311, 0
      %v1383 = vsel %vm1342, %v1312, 0
      %v1386 = vsel %vm1342, %v1313, 0
      %v1389 = vsel %vm1342, %v1314, 0
      %vm1391 = vcmask 1041408
      %v1393 = vsel %vm1391, %v1339, 0
      %1395 = vmatprep.subr.bf16.mxu0 0
      %1396 = vmatpush1.bf16.msra.mxu0 %v1337
      %1397 = vmatprep.subr.bf16.mxu0 0
      %1398 = vmatpush1.bf16.msra.mxu0 %v1338
      %1399 = vmatprep.subr.bf16.mxu0 0
      %1400 = vmatpush1.bf16.msra.mxu0 %v1393
      %1401 = vmatprep.subr.bf16.mxu0 0
      %1402 = vmatpush1.bf16.msra.mxu0 0
      %1403 = vmatprep.subr.bf16.mxu0 0
      %1404 = vmatpush1.bf16.msra.mxu0 0
      %1405 = vmatprep.subr.bf16.mxu0 0
      %1406 = vmatpush1.bf16.msra.mxu0 0
      %1407 = vmatprep.subr.bf16.mxu0 0
      %1408 = vmatpush1.bf16.msra.mxu0 0
      %1409 = vmatprep.subr.bf16.mxu0 0
      %1410 = vmatpush1.bf16.msra.mxu0 0
      %1411 = vmatprep.subr.bf16.mxu0 0
      %1412 = vmatpush1.bf16.msra.mxu0 0
      %1413 = vmatprep.subr.bf16.mxu0 0
      %1414 = vmatpush1.bf16.msra.mxu0 0
      %1415 = vmatprep.subr.bf16.mxu0 0
      %1416 = vmatpush1.bf16.msra.mxu0 0
      %1417 = vmatprep.subr.bf16.mxu0 0
      %1418 = vmatpush1.bf16.msra.mxu0 0
      %1419 = vmatprep.subr.bf16.mxu0 0
      %1420 = vmatpush1.bf16.msra.mxu0 0
      %1421 = vmatprep.subr.bf16.mxu0 0
      %1422 = vmatpush1.bf16.msra.mxu0 0
      %1423 = vmatprep.subr.bf16.mxu0 0
      %1424 = vmatpush1.bf16.msra.mxu0 0
      %1425 = vmatprep.subr.bf16.mxu0 0
      %1426 = vmatpush1.bf16.msra.mxu0 0
      %1427 = vmatprep.mubr.bf16.mxu0 0
      %1428 = vmatmul.mubr.bf16.gmra.mrb[0].mxu0 %v1344
      %v1429 = vpop.f32.mrb[0].mxu0
      %v1430 = vadd.f32 %v1325, %v1429
      %v1431 = vpop.f32.mrb[0].mxu0
      %v1432 = vpop.f32.mrb[0].mxu0
      %v1433 = vadd.f32 %v1325, %v1432
      %v1434 = vpop.f32.mrb[0].mxu0
      %1435 = vmatprep.mubr.bf16.mxu0 0
      %1436 = vmatmul.mubr.bf16.gmra.mrb[0].mxu0 %v1347
      %v1437 = vpop.f32.mrb[0].mxu0
      %v1438 = vadd.f32 %v1325, %v1437
      %v1439 = vpop.f32.mrb[0].mxu0
      %v1440 = vpop.f32.mrb[0].mxu0
      %v1441 = vadd.f32 %v1325, %v1440
      %v1442 = vpop.f32.mrb[0].mxu0
      %1443 = vmatprep.mubr.bf16.mxu0 0
      %1444 = vmatmul.mubr.bf16.gmra.mrb[0].mxu0 %v1350
      %v1445 = vpop.f32.mrb[0].mxu0
      %v1446 = vadd.f32 %v1325, %v1445
      %v1447 = vpop.f32.mrb[0].mxu0
      %v1448 = vpop.f32.mrb[0].mxu0
      %v1449 = vadd.f32 %v1325, %v1448
      %v1450 = vpop.f32.mrb[0].mxu0
      %1451 = vmatprep.mubr.bf16.mxu0 0
      %1452 = vmatmul.mubr.bf16.gmra.mrb[0].mxu0 %v1353
      %v1453 = vpop.f32.mrb[0].mxu0
      %v1454 = vadd.f32 %v1325, %v1453
      %v1455 = vpop.f32.mrb[0].mxu0
      %v1456 = vpop.f32.mrb[0].mxu0
      %v1457 = vadd.f32 %v1325, %v1456
      %v1458 = vpop.f32.mrb[0].mxu0
      %1459 = vmatprep.mubr.bf16.mxu0 0
      %1460 = vmatmul.mubr.bf16.gmra.mrb[0].mxu0 %v1356
      %v1461 = vpop.f32.mrb[0].mxu0
      %v1462 = vadd.f32 %v1325, %v1461
      %v1463 = vpop.f32.mrb[0].mxu0
      %v1464 = vpop.f32.mrb[0].mxu0
      %v1465 = vadd.f32 %v1325, %v1464
      %v1466 = vpop.f32.mrb[0].mxu0
      %1467 = vmatprep.mubr.bf16.mxu0 0
      %1468 = vmatmul.mubr.bf16.gmra.mrb[0].mxu0 %v1359
      %v1469 = vpop.f32.mrb[0].mxu0
      %v1470 = vadd.f32 %v1325, %v1469
      %v1471 = vpop.f32.mrb[0].mxu0
      %v1472 = vpop.f32.mrb[0].mxu0
      %v1473 = vadd.f32 %v1325, %v1472
      %v1474 = vpop.f32.mrb[0].mxu0
      %1475 = vmatprep.mubr.bf16.mxu0 0
      %1476 = vmatmul.mubr.bf16.gmra.mrb[0].mxu0 %v1362
      %v1477 = vpop.f32.mrb[0].mxu0
      %v1478 = vadd.f32 %v1325, %v1477
      %v1479 = vpop.f32.mrb[0].mxu0
      %v1480 = vpop.f32.mrb[0].mxu0
      %v1481 = vadd.f32 %v1325, %v1480
      %v1482 = vpop.f32.mrb[0].mxu0
      %1483 = vmatprep.mubr.bf16.mxu0 0
      %1484 = vmatmul.mubr.bf16.gmra.mrb[0].mxu0 %v1365
      %v1485 = vpop.f32.mrb[0].mxu0
      %v1486 = vadd.f32 %v1325, %v1485
      %v1487 = vpop.f32.mrb[0].mxu0
      %v1488 = vpop.f32.mrb[0].mxu0
      %v1489 = vadd.f32 %v1325, %v1488
      %v1490 = vpop.f32.mrb[0].mxu0
      %1491 = vmatprep.mubr.bf16.mxu0 0
      %1492 = vmatmul.mubr.bf16.gmra.mrb[0].mxu0 %v1368
      %v1493 = vpop.f32.mrb[0].mxu0
      %v1494 = vadd.f32 %v1325, %v1493
      %v1495 = vpop.f32.mrb[0].mxu0
      %v1496 = vpop.f32.mrb[0].mxu0
      %v1497 = vadd.f32 %v1325, %v1496
      %v1498 = vpop.f32.mrb[0].mxu0
      %1499 = vmatprep.mubr.bf16.mxu0 0
      %1500 = vmatmul.mubr.bf16.gmra.mrb[0].mxu0 %v1371
      %v1501 = vpop.f32.mrb[0].mxu0
      %v1502 = vadd.f32 %v1325, %v1501
      %v1503 = vpop.f32.mrb[0].mxu0
      %v1504 = vpop.f32.mrb[0].mxu0
      %v1505 = vadd.f32 %v1325, %v1504
      %v1506 = vpop.f32.mrb[0].mxu0
      %1507 = vmatprep.mubr.bf16.mxu0 0
      %1508 = vmatmul.mubr.bf16.gmra.mrb[0].mxu0 %v1374
      %v1509 = vpop.f32.mrb[0].mxu0
      %v1510 = vadd.f32 %v1325, %v1509
      %v1511 = vpop.f32.mrb[0].mxu0
      %v1512 = vpop.f32.mrb[0].mxu0
      %v1513 = vadd.f32 %v1325, %v1512
      %v1514 = vpop.f32.mrb[0].mxu0
      %1515 = vmatprep.mubr.bf16.mxu0 0
      %1516 = vmatmul.mubr.bf16.gmra.mrb[0].mxu0 %v1377
      %v1517 = vpop.f32.mrb[0].mxu0
      %v1518 = vadd.f32 %v1325, %v1517
      %v1519 = vpop.f32.mrb[0].mxu0
      %v1520 = vpop.f32.mrb[0].mxu0
      %v1521 = vadd.f32 %v1325, %v1520
      %v1522 = vpop.f32.mrb[0].mxu0
      %1523 = vmatprep.mubr.bf16.mxu0 0
      %1524 = vmatmul.mubr.bf16.gmra.mrb[0].mxu0 %v1380
      %v1525 = vpop.f32.mrb[0].mxu0
      %v1526 = vadd.f32 %v1325, %v1525
      %v1527 = vpop.f32.mrb[0].mxu0
      %v1528 = vpop.f32.mrb[0].mxu0
      %v1529 = vadd.f32 %v1325, %v1528
      %v1530 = vpop.f32.mrb[0].mxu0
      %1531 = vmatprep.mubr.bf16.mxu0 0
      %1532 = vmatmul.mubr.bf16.gmra.mrb[0].mxu0 %v1383
      %v1533 = vpop.f32.mrb[0].mxu0
      %v1534 = vadd.f32 %v1325, %v1533
      %v1535 = vpop.f32.mrb[0].mxu0
      %v1536 = vpop.f32.mrb[0].mxu0
      %v1537 = vadd.f32 %v1325, %v1536
      %v1538 = vpop.f32.mrb[0].mxu0
      %1539 = vmatprep.mubr.bf16.mxu0 0
      %1540 = vmatmul.mubr.bf16.gmra.mrb[0].mxu0 %v1386
      %v1541 = vpop.f32.mrb[0].mxu0
      %v1542 = vadd.f32 %v1325, %v1541
      %v1543 = vpop.f32.mrb[0].mxu0
      %v1544 = vpop.f32.mrb[0].mxu0
      %v1545 = vadd.f32 %v1325, %v1544
      %v1546 = vpop.f32.mrb[0].mxu0
      %1547 = vmatprep.mubr.bf16.mxu0 0
      %1548 = vmatmul.mubr.bf16.gmra.mrb[0].mxu0 %v1389
      %v1549 = vpop.f32.mrb[0].mxu0
      %v1550 = vadd.f32 %v1325, %v1549
      %v1551 = vpop.f32.mrb[0].mxu0
      %v1552 = vpop.f32.mrb[0].mxu0
      %v1553 = vadd.f32 %v1325, %v1552
      %v1554 = vpop.f32.mrb[0].mxu0
      %1555 = vdwg.mxu0
      %vm1556 = vcmp.ge.f32.partialorder %v1430, 0.0
      %vm1557 = vcmp.ge.f32.partialorder %v1433, 0.0
      %vm1558 = vcmp.ge.f32.partialorder %v1438, 0.0
      %vm1559 = vcmp.ge.f32.partialorder %v1441, 0.0
      %vm1560 = vcmp.ge.f32.partialorder %v1446, 0.0
      %vm1561 = vcmp.ge.f32.partialorder %v1449, 0.0
      %vm1562 = vcmp.ge.f32.partialorder %v1454, 0.0
      %vm1563 = vcmp.ge.f32.partialorder %v1457, 0.0
      %vm1564 = vcmp.ge.f32.partialorder %v1462, 0.0
      %vm1565 = vcmp.ge.f32.partialorder %v1465, 0.0
      %vm1566 = vcmp.ge.f32.partialorder %v1470, 0.0
      %vm1567 = vcmp.ge.f32.partialorder %v1473, 0.0
      %vm1568 = vcmp.ge.f32.partialorder %v1478, 0.0
      %vm1569 = vcmp.ge.f32.partialorder %v1481, 0.0
      %vm1570 = vcmp.ge.f32.partialorder %v1486, 0.0
      %vm1571 = vcmp.ge.f32.partialorder %v1489, 0.0
      %vm1572 = vcmp.ge.f32.partialorder %v1494, 0.0
      %vm1573 = vcmp.ge.f32.partialorder %v1497, 0.0
      %vm1574 = vcmp.ge.f32.partialorder %v1502, 0.0
      %vm1575 = vcmp.ge.f32.partialorder %v1505, 0.0
      %vm1576 = vcmp.ge.f32.partialorder %v1510, 0.0
      %vm1577 = vcmp.ge.f32.partialorder %v1513, 0.0
      %vm1578 = vcmp.ge.f32.partialorder %v1518, 0.0
      %vm1579 = vcmp.ge.f32.partialorder %v1521, 0.0
      %vm1580 = vcmp.ge.f32.partialorder %v1526, 0.0
      %vm1581 = vcmp.ge.f32.partialorder %v1529, 0.0
      %vm1582 = vcmp.ge.f32.partialorder %v1534, 0.0
      %vm1583 = vcmp.ge.f32.partialorder %v1537, 0.0
      %vm1584 = vcmp.ge.f32.partialorder %v1542, 0.0
      %vm1585 = vcmp.ge.f32.partialorder %v1545, 0.0
      %vm1586 = vcmp.ge.f32.partialorder %v1550, 0.0
      %vm1587 = vcmp.ge.f32.partialorder %v1553, 0.0
      %v1588 = vld [vmem:[%s3] sm:$0x1]
      %v1590 = vlaneseq
      %v1591 = vshrl.u32 %v1590, 7
      %v1592 = vsub.s32 0, %v1591
      %v1593 = vrot.slane %v1588, %v1592
      %v1595 = vmul.f32 %v1593, %v1430
      %v1596 = vmul.f32 %v1593, %v1433
      %v1597 = vmul.f32 %v1593, %v1438
      %v1598 = vmul.f32 %v1593, %v1441
      %v1599 = vmul.f32 %v1593, %v1446
      %v1600 = vmul.f32 %v1593, %v1449
      %v1601 = vmul.f32 %v1593, %v1454
      %v1602 = vmul.f32 %v1593, %v1457
      %v1603 = vmul.f32 %v1593, %v1462
      %v1604 = vmul.f32 %v1593, %v1465
      %v1605 = vmul.f32 %v1593, %v1470
      %v1606 = vmul.f32 %v1593, %v1473
      %v1607 = vmul.f32 %v1593, %v1478
      %v1608 = vmul.f32 %v1593, %v1481
      %v1609 = vmul.f32 %v1593, %v1486
      %v1610 = vmul.f32 %v1593, %v1489
      %v1611 = vmul.f32 %v1593, %v1494
      %v1612 = vmul.f32 %v1593, %v1497
      %v1613 = vmul.f32 %v1593, %v1502
      %v1614 = vmul.f32 %v1593, %v1505
      %v1615 = vmul.f32 %v1593, %v1510
      %v1616 = vmul.f32 %v1593, %v1513
      %v1617 = vmul.f32 %v1593, %v1518
      %v1618 = vmul.f32 %v1593, %v1521
      %v1619 = vmul.f32 %v1593, %v1526
      %v1620 = vmul.f32 %v1593, %v1529
      %v1621 = vmul.f32 %v1593, %v1534
      %v1622 = vmul.f32 %v1593, %v1537
      %v1623 = vmul.f32 %v1593, %v1542
      %v1624 = vmul.f32 %v1593, %v1545
      %v1625 = vmul.f32 %v1593, %v1550
      %v1626 = vmul.f32 %v1593, %v1553
      %v1627 = vsel %vm1556, %v1430, %v1595
      %v1628 = vsel %vm1557, %v1433, %v1596
      %v1629 = vsel %vm1558, %v1438, %v1597
      %v1630 = vsel %vm1559, %v1441, %v1598
      %v1631 = vsel %vm1560, %v1446, %v1599
      %v1632 = vsel %vm1561, %v1449, %v1600
      %v1633 = vsel %vm1562, %v1454, %v1601
      %v1634 = vsel %vm1563, %v1457, %v1602
      %v1635 = vsel %vm1564, %v1462, %v1603
      %v1636 = vsel %vm1565, %v1465, %v1604
      %v1637 = vsel %vm1566, %v1470, %v1605
      %v1638 = vsel %vm1567, %v1473, %v1606
      %v1639 = vsel %vm1568, %v1478, %v1607
      %v1640 = vsel %vm1569, %v1481, %v1608
      %v1641 = vsel %vm1570, %v1486, %v1609
      %v1642 = vsel %vm1571, %v1489, %v1610
      %v1643 = vsel %vm1572, %v1494, %v1611
      %v1644 = vsel %vm1573, %v1497, %v1612
      %v1645 = vsel %vm1574, %v1502, %v1613
      %v1646 = vsel %vm1575, %v1505, %v1614
      %v1647 = vsel %vm1576, %v1510, %v1615
      %v1648 = vsel %vm1577, %v1513, %v1616
      %v1649 = vsel %vm1578, %v1518, %v1617
      %v1650 = vsel %vm1579, %v1521, %v1618
      %v1651 = vsel %vm1580, %v1526, %v1619
      %v1652 = vsel %vm1581, %v1529, %v1620
      %v1653 = vsel %vm1582, %v1534, %v1621
      %v1654 = vsel %vm1583, %v1537, %v1622
      %v1655 = vsel %vm1584, %v1542, %v1623
      %v1656 = vsel %vm1585, %v1545, %v1624
      %v1657 = vsel %vm1586, %v1550, %v1625
      %v1658 = vsel %vm1587, %v1553, %v1626
      %1659 = vst [vmem:[%s197] sm:$0xff] %v1627
      %1660 = vst [vmem:[%s197 + $0x8] sm:$0xff] %v1628
      %1661 = vst [vmem:[%s197 + $0x10] sm:$0xff] %v1629
      %1662 = vst [vmem:[%s197 + $0x18] sm:$0xff] %v1630
      %1663 = vst [vmem:[%s197 + $0x20] sm:$0xff] %v1631
      %1664 = vst [vmem:[%s197 + $0x28] sm:$0xff] %v1632
      %1665 = vst [vmem:[%s197 + $0x30] sm:$0xff] %v1633
      %1666 = vst [vmem:[%s197 + $0x38] sm:$0xff] %v1634
      %1667 = vst [vmem:[%s197 + $0x40] sm:$0xff] %v1635
      %1668 = vst [vmem:[%s197 + $0x48] sm:$0xff] %v1636
      %1669 = vst [vmem:[%s197 + $0x50] sm:$0xff] %v1637
      %1670 = vst [vmem:[%s197 + $0x58] sm:$0xff] %v1638
      %1671 = vst [vmem:[%s197 + $0x60] sm:$0xff] %v1639
      %1672 = vst [vmem:[%s197 + $0x68] sm:$0xff] %v1640
      %1673 = vst [vmem:[%s197 + $0x70] sm:$0xff] %v1641
      %1674 = vst [vmem:[%s197 + $0x78] sm:$0xff] %v1642
      %1675 = vst [vmem:[%s197 + $0x80] sm:$0xff] %v1643
      %1676 = vst [vmem:[%s197 + $0x88] sm:$0xff] %v1644
      %1677 = vst [vmem:[%s197 + $0x90] sm:$0xff] %v1645
      %1678 = vst [vmem:[%s197 + $0x98] sm:$0xff] %v1646
      %1679 = vst [vmem:[%s197 + $0xa0] sm:$0xff] %v1647
      %1680 = vst [vmem:[%s197 + $0xa8] sm:$0xff] %v1648
      %1681 = vst [vmem:[%s197 + $0xb0] sm:$0xff] %v1649
      %1682 = vst [vmem:[%s197 + $0xb8] sm:$0xff] %v1650
      %1683 = vst [vmem:[%s197 + $0xc0] sm:$0xff] %v1651
      %1684 = vst [vmem:[%s197 + $0xc8] sm:$0xff] %v1652
      %1685 = vst [vmem:[%s197 + $0xd0] sm:$0xff] %v1653
      %1686 = vst [vmem:[%s197 + $0xd8] sm:$0xff] %v1654
      %1687 = vst [vmem:[%s197 + $0xe0] sm:$0xff] %v1655
      %1688 = vst [vmem:[%s197 + $0xe8] sm:$0xff] %v1656
      %1689 = vst [vmem:[%s197 + $0xf0] sm:$0xff] %v1657
      %1690 = vst [vmem:[%s197 + $0xf8] sm:$0xff] %v1658
      %s1691 = smul.u32 32, %s15
      %p1692 = scmp.lt.s32.totalorder %s1691, 63
      %s1693 = scalar_select %p1692, %s1691, 63
      %s1694 = smul.addr %s1693, 8
      %s1695 = scalar_lea.vmem %s4, %s1694
      // Predicated region
      $region37: #{conv_bn_prelu.1} parent=35 // pred_check
        %p1696 = pneg %p122
      $region38: #{conv_bn_prelu.1} parent=35 // pred_check_branch
        %1698 = sbr.rel (%p1696) target = $region40
      $region39: #{conv_bn_prelu.1} parent=35 // pred_region
        %s1699 = smul.u32 32, %s15
      $region40: #{conv_bn_prelu.1} parent=35 // pred_fallthru
        _
    $region36: #{conv_bn_prelu.1} parent=5 // pred_fallthru
      _
    %p1700 = scmp.le.s32.totalorder 2, %s10
    // Predicated region
    $region41: #{conv_bn_prelu.1} parent=5 // pred_check
      %p1701 = pneg %p1700
    $region42: #{conv_bn_prelu.1} parent=5 // pred_check_branch
      %1703 = sbr.rel (%p1701) target = $region44
    $region43: #{conv_bn_prelu.1} parent=5 // pred_region
      %s1704 = ssub.s32 %s10, 2
      // Predicated region
      $region45: #{conv_bn_prelu.1} parent=43 // pred_check
        %p1705 = pneg %p128
      $region46: #{conv_bn_prelu.1} parent=43 // pred_check_branch
        %1707 = sbr.rel (%p1705) target = $region48
      $region47: #{conv_bn_prelu.1} parent=43 // pred_region
        %s1708 = smul.u32 32, %s16
        %p1709 = scmp.lt.s32.totalorder %s1708, 63
        %s1710 = scalar_select %p1709, %s1708, 63
        %s1711 = smul.addr %s1710, 8
        %s1712 = scalar_lea.vmem %s4, %s1711
      $region48: #{conv_bn_prelu.1} parent=43 // pred_fallthru
        _
    $region44: #{conv_bn_prelu.1} parent=5 // pred_fallthru
      _
  $region6: #{conv_bn_prelu.1} parent=0 // loop_footer
    %s14 = sadd.s32 1, %s10
  $region7: #{conv_bn_prelu.1} parent=0 // loop_footer_branch
    %9 = sbr.rel target = $region3
  $region8: #{conv_bn_prelu.1} parent=0 // loop_exit
    _

</llo_original>
